<compile_context>
chip_gen: v6e
topology: v6e:2x2x1
jax: 0.10.0
libtpu: 0.0.40
codegen_flags: <defaults>
</compile_context>

<pallas_src>
import jax
import jax.numpy as jnp
from jax import lax
from jax.experimental import pallas as pl
from jax.experimental.pallas import tpu as pltpu

_LANE = 128     # f32 lane width of a vreg
_SUBLANE = 8    # f32 sublane count of a vreg


def _round_up(n, m):
    return ((n + m - 1) // m) * m


def _padded_f32_bytes(shape):
    """Bytes of an f32 array once its last two dims are padded to (8, 128) tiles."""
    dims = list(shape)
    if len(dims) >= 2:
        dims[-1] = _round_up(dims[-1], _LANE)
        dims[-2] = _round_up(dims[-2], _SUBLANE)
    n = 1
    for d in dims:
        n *= d
    return n * 4


def _fast_sigmoid(x):
    # Mathematically exact: sigmoid(x) = 0.5 * tanh(0.5 * x) + 0.5.
    # One EUP tanh (separate VLIW slot) + cheap VPU mul/add; no divide on the serial path.
    return 0.5 * jnp.tanh(0.5 * x) + 0.5


def _make_lstm_kernel(T, Bp, Hp, unroll):
    """Build the single-invocation LSTM kernel (shapes baked in at trace time)."""

    def kernel(x_ref, wih_ref, whh_ref, b_ref, wl_ref, bl_ref, out_ref, x2_scr):
        # ---- 1) Hoisted, non-recurrent input projection: one tall MXU matmul, bias folded once.
        proj = (jnp.dot(x_ref[...], wih_ref[...], preferred_element_type=jnp.float32)
                + b_ref[...])
        # Bp % 8 == 0, so splitting the leading (sublane) dim is layout-preserving; done once,
        # outside the loop, even if it were to materialize.
        x2_scr[...] = proj.reshape(T, Bp, 4 * Hp)

        # ---- 2) Serial recurrence, in-kernel, modest unroll (cross-step overlap is impossible
        #         anyway because of the h/c dependence chain).
        def step(t, carry):
            h, c = carry
            gates = x2_scr[t] + jnp.dot(h, whh_ref[...],
                                        preferred_element_type=jnp.float32)
            # Hp is a multiple of 128 -> every gate slice is vreg/lane aligned.
            i_g = _fast_sigmoid(gates[:, 0 * Hp:1 * Hp])
            f_g = _fast_sigmoid(gates[:, 1 * Hp:2 * Hp])
            g_g = jnp.tanh(gates[:, 2 * Hp:3 * Hp])
            o_g = _fast_sigmoid(gates[:, 3 * Hp:4 * Hp])
            c_new = f_g * c + i_g * g_g
            h_new = o_g * jnp.tanh(c_new)
            return h_new, c_new

        h0 = jnp.zeros((Bp, Hp), jnp.float32)
        c0 = jnp.zeros((Bp, Hp), jnp.float32)
        h_T, _ = lax.fori_loop(0, T, step, (h0, c0), unroll=unroll)

        # ---- 3) Classifier head: VPU multiply + lane reduction (no N=1 MXU matmul).
        #         Output written lane-dense (Bp, 128); wrapper slices to (B, 1).
        logits = jnp.sum(h_T * wl_ref[...], axis=-1, keepdims=True) + bl_ref[...]
        out_ref[...] = jnp.broadcast_to(_fast_sigmoid(logits), out_ref.shape)

    return kernel


def lstm_classifier_forward(x, params):
    """x: (T, B, IN) float32. Returns (B, 1) float32 = sigmoid(Linear(h_T))."""
    x = x.astype(jnp.float32)
    T, B, IN = x.shape
    w_ih = params["w_ih"].astype(jnp.float32)   # (4H, IN)  gate order i,f,g,o
    w_hh = params["w_hh"].astype(jnp.float32)   # (4H, H)
    b_ih = params["b_ih"].astype(jnp.float32)   # (4H,)
    b_hh = params["b_hh"].astype(jnp.float32)   # (4H,)
    w_l = params["w_l"].astype(jnp.float32)     # (1, H)
    b_l = params["b_l"].astype(jnp.float32)     # (1,)
    H = w_hh.shape[1]

    Bp = _round_up(B, _SUBLANE)   # fill f32 sublanes / give the recurrent matmul a real M
    Hp = _round_up(H, _LANE)      # vreg-aligned gate slices

    # Zero-pad batch; flatten time*batch so the hoisted input projection is one matmul.
    x_p = jnp.zeros((T, Bp, IN), jnp.float32).at[:, :B, :].set(x)
    x_flat = x_p.reshape(T * Bp, IN)

    def pack_gates_T(w, d_in, d_in_p):
        # (4H, d_in) -> (d_in_p, 4*Hp), transposed, each gate block zero-padded H -> Hp.
        w4 = w.reshape(4, H, d_in)
        w4p = jnp.zeros((4, Hp, d_in_p), jnp.float32).at[:, :H, :d_in].set(w4)
        return w4p.transpose(2, 0, 1).reshape(d_in_p, 4 * Hp)

    wih_t = pack_gates_T(w_ih, IN, IN)   # (IN, 4*Hp)
    whh_t = pack_gates_T(w_hh, H, Hp)    # (Hp, 4*Hp), padded rows are zero
    b4 = (b_ih + b_hh).reshape(4, H)
    b_p = jnp.zeros((4, Hp), jnp.float32).at[:, :H].set(b4).reshape(1, 4 * Hp)
    wl_p = jnp.zeros((1, Hp), jnp.float32).at[:, :H].set(w_l)   # (1, Hp)
    bl_p = b_l.reshape(1, 1)                                    # (1, 1)

    # Cap unrolling (review item): the serial dependence chain gains nothing from full unroll.
    unroll = max(1, min(8, T))
    kernel = _make_lstm_kernel(T, Bp, Hp, unroll)

    # Explicit VMEM budget: everything resident (no grid => no double-buffering), plus margin
    # for compiler-internal scratch; capped below v7x's 64 MiB physical VMEM.  Larger T/H should
    # switch to the T-chunked streaming design instead of raising this further.
    resident = sum(_padded_f32_bytes(s) for s in [
        (T * Bp, IN),        # x_flat
        (IN, 4 * Hp),        # wih_t
        (Hp, 4 * Hp),        # whh_t
        (1, 4 * Hp),         # b_p
        (1, Hp),             # wl_p
        (1, 1),              # bl_p
        (Bp, _LANE),         # out
        (T, Bp, 4 * Hp),     # x2 scratch
    ])
    vmem_limit = int(min(64 << 20, max(2 * resident + (4 << 20), 16 << 20)))

    vmem_spec = pl.BlockSpec(memory_space=pltpu.MemorySpace.VMEM)
    out = pl.pallas_call(
        kernel,
        out_shape=jax.ShapeDtypeStruct((Bp, _LANE), jnp.float32),
        in_specs=[vmem_spec] * 6,     # whole arrays resident in VMEM, copied once (no grid)
        out_specs=vmem_spec,
        scratch_shapes=[pltpu.VMEM((T, Bp, 4 * Hp), jnp.float32)],  # hoisted x-projection
        compiler_params=pltpu.CompilerParams(vmem_limit_bytes=vmem_limit),
    )(x_flat, wih_t, whh_t, b_p, wl_p, bl_p)
    return out[:B, :1]


def lstm_classifier_reference(x, params):
    """Pure-JAX reference matching PyTorch nn.LSTM + Linear + sigmoid semantics."""
    w_ih, w_hh, b_ih, b_hh, w_l, b_l = (params[k] for k in
                                        ("w_ih", "w_hh", "b_ih", "b_hh", "w_l", "b_l"))
    H = w_hh.shape[1]
    B = x.shape[1]

    def step(carry, x_t):
        h, c = carry
        gates = x_t @ w_ih.T + b_ih + h @ w_hh.T + b_hh
        i = jax.nn.sigmoid(gates[:, 0 * H:1 * H])
        f = jax.nn.sigmoid(gates[:, 1 * H:2 * H])
        g = jnp.tanh(gates[:, 2 * H:3 * H])
        o = jax.nn.sigmoid(gates[:, 3 * H:4 * H])
        c = f * c + i * g
        h = o * jnp.tanh(c)
        return (h, c), h

    h0 = jnp.zeros((B, H), jnp.float32)
    c0 = jnp.zeros((B, H), jnp.float32)
    (h_T, _), _ = lax.scan(step, (h0, c0), x)
    return jax.nn.sigmoid(h_T @ w_l.T + b_l)


def init_params(key, input_size, hidden_size):
    """Deterministic init mimicking PyTorch's U(-1/sqrt(H), 1/sqrt(H))."""
    k = 1.0 / jnp.sqrt(jnp.float32(hidden_size))
    keys = jax.random.split(key, 6)
    u = lambda kk, shape: jax.random.uniform(kk, shape, jnp.float32, -k, k)
    return {
        "w_ih": u(keys[0], (4 * hidden_size, input_size)),
        "w_hh": u(keys[1], (4 * hidden_size, hidden_size)),
        "b_ih": u(keys[2], (4 * hidden_size,)),
        "b_hh": u(keys[3], (4 * hidden_size,)),
        "w_l":  u(keys[4], (1, hidden_size)),
        "b_l":  u(keys[5], (1,)),
    }


if __name__ == "__main__":
    SEQ, BATCH, INPUT, HIDDEN = 8, 2, 16, 32

    key = jax.random.PRNGKey(0)
    k_x, k_p = jax.random.split(key)
    x = jax.random.normal(k_x, (SEQ, BATCH, INPUT), jnp.float32)
    params = init_params(k_p, INPUT, HIDDEN)

    y = jax.block_until_ready(lstm_classifier_forward(x, params))

    y_ref = lstm_classifier_reference(x, params)
    assert y.shape == (BATCH, 1)
    # tanh-form sigmoid is mathematically exact; tolerance covers f32 rounding differences
    # vs jax.nn.sigmoid accumulated over the T serial steps.
    assert jnp.allclose(y, y_ref, atol=3e-5, rtol=3e-5), (y, y_ref)

    print("KERNEL_OK")
</pallas_src>

<mosaic_0001>
module attributes {stable_mosaic.version = 11 : i64} {
  func.func @kernel(%arg0: memref<64x16xf32, #tpu.memory_space<vmem>>, %arg1: memref<16x512xf32, #tpu.memory_space<vmem>>, %arg2: memref<128x512xf32, #tpu.memory_space<vmem>>, %arg3: memref<1x512xf32, #tpu.memory_space<vmem>>, %arg4: memref<1x128xf32, #tpu.memory_space<vmem>>, %arg5: memref<1x1xf32, #tpu.memory_space<vmem>>, %arg6: memref<8x128xf32, #tpu.memory_space<vmem>>, %arg7: memref<8x8x512xf32, #tpu.memory_space<vmem>>) attributes {dimension_semantics = [], scalar_prefetch = 0 : i64, scratch_operands = 1 : i64, tpu.core_type = #tpu.core_type<tc>} {
    %c0 = arith.constant 0 : index
    %c0_0 = arith.constant 0 : index
    %0 = vector.load %arg0[%c0, %c0_0] : memref<64x16xf32, #tpu.memory_space<vmem>>, vector<64x16xf32>
    %c0_1 = arith.constant 0 : index
    %c0_2 = arith.constant 0 : index
    %1 = vector.load %arg1[%c0_1, %c0_2] : memref<16x512xf32, #tpu.memory_space<vmem>>, vector<16x512xf32>
    %cst = arith.constant dense<0.000000e+00> : vector<64x512xf32>
    %2 = tpu.matmul %0, %1, %cst {dimension_numbers = #tpu.dot_dimension_numbers<[1], [0], [0], [1], [0, 0, 1, 1], [], []>} : vector<64x16xf32>, vector<16x512xf32>, vector<64x512xf32> -> vector<64x512xf32>
    %c0_3 = arith.constant 0 : index
    %c0_4 = arith.constant 0 : index
    %3 = vector.load %arg3[%c0_3, %c0_4] : memref<1x512xf32, #tpu.memory_space<vmem>>, vector<1x512xf32>
    %4 = vector.broadcast %3 : vector<1x512xf32> to vector<64x512xf32>
    %5 = arith.addf %2, %4 : vector<64x512xf32>
    %6 = vector.shape_cast %5 : vector<64x512xf32> to vector<8x8x512xf32>
    %c0_5 = arith.constant 0 : index
    %c0_6 = arith.constant 0 : index
    %c0_7 = arith.constant 0 : index
    %7 = vector.load %arg7[%c0_5, %c0_6, %c0_7] : memref<8x8x512xf32, #tpu.memory_space<vmem>>, vector<8x8x512xf32>
    tpu.vector_store %arg7[%c0_5, %c0_6, %c0_7], %6 {strides = array<i32>} : memref<8x8x512xf32, #tpu.memory_space<vmem>>, vector<8x8x512xf32>,
    %cst_8 = arith.constant 0.000000e+00 : f32
    %8 = vector.broadcast %cst_8 : f32 to vector<8x128xf32>
    %cst_9 = arith.constant 0.000000e+00 : f32
    %9 = vector.broadcast %cst_9 : f32 to vector<8x128xf32>
    %c0_i32 = arith.constant 0 : i32
    %10 = arith.index_cast %c0_i32 : i32 to index
    %c0_10 = arith.constant 0 : index
    %c0_11 = arith.constant 0 : index
    %11 = vector.load %arg7[%10, %c0_10, %c0_11] : memref<8x8x512xf32, #tpu.memory_space<vmem>>, vector<1x8x512xf32>
    %12 = vector.shape_cast %11 : vector<1x8x512xf32> to vector<8x512xf32>
    %c0_12 = arith.constant 0 : index
    %c0_13 = arith.constant 0 : index
    %13 = vector.load %arg2[%c0_12, %c0_13] : memref<128x512xf32, #tpu.memory_space<vmem>>, vector<128x512xf32>
    %cst_14 = arith.constant dense<0.000000e+00> : vector<8x512xf32>
    %14 = tpu.matmul %8, %13, %cst_14 {dimension_numbers = #tpu.dot_dimension_numbers<[1], [0], [0], [1], [0, 0, 1, 1], [], []>} : vector<8x128xf32>, vector<128x512xf32>, vector<8x512xf32> -> vector<8x512xf32>
    %15 = arith.addf %12, %14 : vector<8x512xf32>
    %16 = vector.extract_strided_slice %15 {offsets = [0, 0], sizes = [8, 128], strides = [1, 1]} : vector<8x512xf32> to vector<8x128xf32>
    %cst_15 = arith.constant 5.000000e-01 : f32
    %17 = vector.broadcast %cst_15 : f32 to vector<8x128xf32>
    %18 = arith.mulf %17, %16 : vector<8x128xf32>
    %19 = math.tanh %18 : vector<8x128xf32>
    %cst_16 = arith.constant 5.000000e-01 : f32
    %20 = vector.broadcast %cst_16 : f32 to vector<8x128xf32>
    %21 = arith.mulf %20, %19 : vector<8x128xf32>
    %cst_17 = arith.constant 5.000000e-01 : f32
    %22 = vector.broadcast %cst_17 : f32 to vector<8x128xf32>
    %23 = arith.addf %21, %22 : vector<8x128xf32>
    %24 = vector.extract_strided_slice %15 {offsets = [0, 128], sizes = [8, 128], strides = [1, 1]} : vector<8x512xf32> to vector<8x128xf32>
    %cst_18 = arith.constant 5.000000e-01 : f32
    %25 = vector.broadcast %cst_18 : f32 to vector<8x128xf32>
    %26 = arith.mulf %25, %24 : vector<8x128xf32>
    %27 = math.tanh %26 : vector<8x128xf32>
    %cst_19 = arith.constant 5.000000e-01 : f32
    %28 = vector.broadcast %cst_19 : f32 to vector<8x128xf32>
    %29 = arith.mulf %28, %27 : vector<8x128xf32>
    %cst_20 = arith.constant 5.000000e-01 : f32
    %30 = vector.broadcast %cst_20 : f32 to vector<8x128xf32>
    %31 = arith.addf %29, %30 : vector<8x128xf32>
    %32 = vector.extract_strided_slice %15 {offsets = [0, 256], sizes = [8, 128], strides = [1, 1]} : vector<8x512xf32> to vector<8x128xf32>
    %33 = math.tanh %32 : vector<8x128xf32>
    %34 = vector.extract_strided_slice %15 {offsets = [0, 384], sizes = [8, 128], strides = [1, 1]} : vector<8x512xf32> to vector<8x128xf32>
    %cst_21 = arith.constant 5.000000e-01 : f32
    %35 = vector.broadcast %cst_21 : f32 to vector<8x128xf32>
    %36 = arith.mulf %35, %34 : vector<8x128xf32>
    %37 = math.tanh %36 : vector<8x128xf32>
    %cst_22 = arith.constant 5.000000e-01 : f32
    %38 = vector.broadcast %cst_22 : f32 to vector<8x128xf32>
    %39 = arith.mulf %38, %37 : vector<8x128xf32>
    %cst_23 = arith.constant 5.000000e-01 : f32
    %40 = vector.broadcast %cst_23 : f32 to vector<8x128xf32>
    %41 = arith.addf %39, %40 : vector<8x128xf32>
    %42 = arith.mulf %31, %9 : vector<8x128xf32>
    %43 = arith.mulf %23, %33 : vector<8x128xf32>
    %44 = arith.addf %42, %43 : vector<8x128xf32>
    %45 = math.tanh %44 : vector<8x128xf32>
    %46 = arith.mulf %41, %45 : vector<8x128xf32>
    %c1_i32 = arith.constant 1 : i32
    %47 = arith.index_cast %c1_i32 : i32 to index
    %c0_24 = arith.constant 0 : index
    %c0_25 = arith.constant 0 : index
    %48 = vector.load %arg7[%47, %c0_24, %c0_25] : memref<8x8x512xf32, #tpu.memory_space<vmem>>, vector<1x8x512xf32>
    %49 = vector.shape_cast %48 : vector<1x8x512xf32> to vector<8x512xf32>
    %c0_26 = arith.constant 0 : index
    %c0_27 = arith.constant 0 : index
    %50 = vector.load %arg2[%c0_26, %c0_27] : memref<128x512xf32, #tpu.memory_space<vmem>>, vector<128x512xf32>
    %cst_28 = arith.constant dense<0.000000e+00> : vector<8x512xf32>
    %51 = tpu.matmul %46, %50, %cst_28 {dimension_numbers = #tpu.dot_dimension_numbers<[1], [0], [0], [1], [0, 0, 1, 1], [], []>} : vector<8x128xf32>, vector<128x512xf32>, vector<8x512xf32> -> vector<8x512xf32>
    %52 = arith.addf %49, %51 : vector<8x512xf32>
    %53 = vector.extract_strided_slice %52 {offsets = [0, 0], sizes = [8, 128], strides = [1, 1]} : vector<8x512xf32> to vector<8x128xf32>
    %cst_29 = arith.constant 5.000000e-01 : f32
    %54 = vector.broadcast %cst_29 : f32 to vector<8x128xf32>
    %55 = arith.mulf %54, %53 : vector<8x128xf32>
    %56 = math.tanh %55 : vector<8x128xf32>
    %cst_30 = arith.constant 5.000000e-01 : f32
    %57 = vector.broadcast %cst_30 : f32 to vector<8x128xf32>
    %58 = arith.mulf %57, %56 : vector<8x128xf32>
    %cst_31 = arith.constant 5.000000e-01 : f32
    %59 = vector.broadcast %cst_31 : f32 to vector<8x128xf32>
    %60 = arith.addf %58, %59 : vector<8x128xf32>
    %61 = vector.extract_strided_slice %52 {offsets = [0, 128], sizes = [8, 128], strides = [1, 1]} : vector<8x512xf32> to vector<8x128xf32>
    %cst_32 = arith.constant 5.000000e-01 : f32
    %62 = vector.broadcast %cst_32 : f32 to vector<8x128xf32>
    %63 = arith.mulf %62, %61 : vector<8x128xf32>
    %64 = math.tanh %63 : vector<8x128xf32>
    %cst_33 = arith.constant 5.000000e-01 : f32
    %65 = vector.broadcast %cst_33 : f32 to vector<8x128xf32>
    %66 = arith.mulf %65, %64 : vector<8x128xf32>
    %cst_34 = arith.constant 5.000000e-01 : f32
    %67 = vector.broadcast %cst_34 : f32 to vector<8x128xf32>
    %68 = arith.addf %66, %67 : vector<8x128xf32>
    %69 = vector.extract_strided_slice %52 {offsets = [0, 256], sizes = [8, 128], strides = [1, 1]} : vector<8x512xf32> to vector<8x128xf32>
    %70 = math.tanh %69 : vector<8x128xf32>
    %71 = vector.extract_strided_slice %52 {offsets = [0, 384], sizes = [8, 128], strides = [1, 1]} : vector<8x512xf32> to vector<8x128xf32>
    %cst_35 = arith.constant 5.000000e-01 : f32
    %72 = vector.broadcast %cst_35 : f32 to vector<8x128xf32>
    %73 = arith.mulf %72, %71 : vector<8x128xf32>
    %74 = math.tanh %73 : vector<8x128xf32>
    %cst_36 = arith.constant 5.000000e-01 : f32
    %75 = vector.broadcast %cst_36 : f32 to vector<8x128xf32>
    %76 = arith.mulf %75, %74 : vector<8x128xf32>
    %cst_37 = arith.constant 5.000000e-01 : f32
    %77 = vector.broadcast %cst_37 : f32 to vector<8x128xf32>
    %78 = arith.addf %76, %77 : vector<8x128xf32>
    %79 = arith.mulf %68, %44 : vector<8x128xf32>
    %80 = arith.mulf %60, %70 : vector<8x128xf32>
    %81 = arith.addf %79, %80 : vector<8x128xf32>
    %82 = math.tanh %81 : vector<8x128xf32>
    %83 = arith.mulf %78, %82 : vector<8x128xf32>
    %c2_i32 = arith.constant 2 : i32
    %84 = arith.index_cast %c2_i32 : i32 to index
    %c0_38 = arith.constant 0 : index
    %c0_39 = arith.constant 0 : index
    %85 = vector.load %arg7[%84, %c0_38, %c0_39] : memref<8x8x512xf32, #tpu.memory_space<vmem>>, vector<1x8x512xf32>
    %86 = vector.shape_cast %85 : vector<1x8x512xf32> to vector<8x512xf32>
    %c0_40 = arith.constant 0 : index
    %c0_41 = arith.constant 0 : index
    %87 = vector.load %arg2[%c0_40, %c0_41] : memref<128x512xf32, #tpu.memory_space<vmem>>, vector<128x512xf32>
    %cst_42 = arith.constant dense<0.000000e+00> : vector<8x512xf32>
    %88 = tpu.matmul %83, %87, %cst_42 {dimension_numbers = #tpu.dot_dimension_numbers<[1], [0], [0], [1], [0, 0, 1, 1], [], []>} : vector<8x128xf32>, vector<128x512xf32>, vector<8x512xf32> -> vector<8x512xf32>
    %89 = arith.addf %86, %88 : vector<8x512xf32>
    %90 = vector.extract_strided_slice %89 {offsets = [0, 0], sizes = [8, 128], strides = [1, 1]} : vector<8x512xf32> to vector<8x128xf32>
    %cst_43 = arith.constant 5.000000e-01 : f32
    %91 = vector.broadcast %cst_43 : f32 to vector<8x128xf32>
    %92 = arith.mulf %91, %90 : vector<8x128xf32>
    %93 = math.tanh %92 : vector<8x128xf32>
    %cst_44 = arith.constant 5.000000e-01 : f32
    %94 = vector.broadcast %cst_44 : f32 to vector<8x128xf32>
    %95 = arith.mulf %94, %93 : vector<8x128xf32>
    %cst_45 = arith.constant 5.000000e-01 : f32
    %96 = vector.broadcast %cst_45 : f32 to vector<8x128xf32>
    %97 = arith.addf %95, %96 : vector<8x128xf32>
    %98 = vector.extract_strided_slice %89 {offsets = [0, 128], sizes = [8, 128], strides = [1, 1]} : vector<8x512xf32> to vector<8x128xf32>
    %cst_46 = arith.constant 5.000000e-01 : f32
    %99 = vector.broadcast %cst_46 : f32 to vector<8x128xf32>
    %100 = arith.mulf %99, %98 : vector<8x128xf32>
    %101 = math.tanh %100 : vector<8x128xf32>
    %cst_47 = arith.constant 5.000000e-01 : f32
    %102 = vector.broadcast %cst_47 : f32 to vector<8x128xf32>
    %103 = arith.mulf %102, %101 : vector<8x128xf32>
    %cst_48 = arith.constant 5.000000e-01 : f32
    %104 = vector.broadcast %cst_48 : f32 to vector<8x128xf32>
    %105 = arith.addf %103, %104 : vector<8x128xf32>
    %106 = vector.extract_strided_slice %89 {offsets = [0, 256], sizes = [8, 128], strides = [1, 1]} : vector<8x512xf32> to vector<8x128xf32>
    %107 = math.tanh %106 : vector<8x128xf32>
    %108 = vector.extract_strided_slice %89 {offsets = [0, 384], sizes = [8, 128], strides = [1, 1]} : vector<8x512xf32> to vector<8x128xf32>
    %cst_49 = arith.constant 5.000000e-01 : f32
    %109 = vector.broadcast %cst_49 : f32 to vector<8x128xf32>
    %110 = arith.mulf %109, %108 : vector<8x128xf32>
    %111 = math.tanh %110 : vector<8x128xf32>
    %cst_50 = arith.constant 5.000000e-01 : f32
    %112 = vector.broadcast %cst_50 : f32 to vector<8x128xf32>
    %113 = arith.mulf %112, %111 : vector<8x128xf32>
    %cst_51 = arith.constant 5.000000e-01 : f32
    %114 = vector.broadcast %cst_51 : f32 to vector<8x128xf32>
    %115 = arith.addf %113, %114 : vector<8x128xf32>
    %116 = arith.mulf %105, %81 : vector<8x128xf32>
    %117 = arith.mulf %97, %107 : vector<8x128xf32>
    %118 = arith.addf %116, %117 : vector<8x128xf32>
    %119 = math.tanh %118 : vector<8x128xf32>
    %120 = arith.mulf %115, %119 : vector<8x128xf32>
    %c3_i32 = arith.constant 3 : i32
    %121 = arith.index_cast %c3_i32 : i32 to index
    %c0_52 = arith.constant 0 : index
    %c0_53 = arith.constant 0 : index
    %122 = vector.load %arg7[%121, %c0_52, %c0_53] : memref<8x8x512xf32, #tpu.memory_space<vmem>>, vector<1x8x512xf32>
    %123 = vector.shape_cast %122 : vector<1x8x512xf32> to vector<8x512xf32>
    %c0_54 = arith.constant 0 : index
    %c0_55 = arith.constant 0 : index
    %124 = vector.load %arg2[%c0_54, %c0_55] : memref<128x512xf32, #tpu.memory_space<vmem>>, vector<128x512xf32>
    %cst_56 = arith.constant dense<0.000000e+00> : vector<8x512xf32>
    %125 = tpu.matmul %120, %124, %cst_56 {dimension_numbers = #tpu.dot_dimension_numbers<[1], [0], [0], [1], [0, 0, 1, 1], [], []>} : vector<8x128xf32>, vector<128x512xf32>, vector<8x512xf32> -> vector<8x512xf32>
    %126 = arith.addf %123, %125 : vector<8x512xf32>
    %127 = vector.extract_strided_slice %126 {offsets = [0, 0], sizes = [8, 128], strides = [1, 1]} : vector<8x512xf32> to vector<8x128xf32>
    %cst_57 = arith.constant 5.000000e-01 : f32
    %128 = vector.broadcast %cst_57 : f32 to vector<8x128xf32>
    %129 = arith.mulf %128, %127 : vector<8x128xf32>
    %130 = math.tanh %129 : vector<8x128xf32>
    %cst_58 = arith.constant 5.000000e-01 : f32
    %131 = vector.broadcast %cst_58 : f32 to vector<8x128xf32>
    %132 = arith.mulf %131, %130 : vector<8x128xf32>
    %cst_59 = arith.constant 5.000000e-01 : f32
    %133 = vector.broadcast %cst_59 : f32 to vector<8x128xf32>
    %134 = arith.addf %132, %133 : vector<8x128xf32>
    %135 = vector.extract_strided_slice %126 {offsets = [0, 128], sizes = [8, 128], strides = [1, 1]} : vector<8x512xf32> to vector<8x128xf32>
    %cst_60 = arith.constant 5.000000e-01 : f32
    %136 = vector.broadcast %cst_60 : f32 to vector<8x128xf32>
    %137 = arith.mulf %136, %135 : vector<8x128xf32>
    %138 = math.tanh %137 : vector<8x128xf32>
    %cst_61 = arith.constant 5.000000e-01 : f32
    %139 = vector.broadcast %cst_61 : f32 to vector<8x128xf32>
    %140 = arith.mulf %139, %138 : vector<8x128xf32>
    %cst_62 = arith.constant 5.000000e-01 : f32
    %141 = vector.broadcast %cst_62 : f32 to vector<8x128xf32>
    %142 = arith.addf %140, %141 : vector<8x128xf32>
    %143 = vector.extract_strided_slice %126 {offsets = [0, 256], sizes = [8, 128], strides = [1, 1]} : vector<8x512xf32> to vector<8x128xf32>
    %144 = math.tanh %143 : vector<8x128xf32>
    %145 = vector.extract_strided_slice %126 {offsets = [0, 384], sizes = [8, 128], strides = [1, 1]} : vector<8x512xf32> to vector<8x128xf32>
    %cst_63 = arith.constant 5.000000e-01 : f32
    %146 = vector.broadcast %cst_63 : f32 to vector<8x128xf32>
    %147 = arith.mulf %146, %145 : vector<8x128xf32>
    %148 = math.tanh %147 : vector<8x128xf32>
    %cst_64 = arith.constant 5.000000e-01 : f32
    %149 = vector.broadcast %cst_64 : f32 to vector<8x128xf32>
    %150 = arith.mulf %149, %148 : vector<8x128xf32>
    %cst_65 = arith.constant 5.000000e-01 : f32
    %151 = vector.broadcast %cst_65 : f32 to vector<8x128xf32>
    %152 = arith.addf %150, %151 : vector<8x128xf32>
    %153 = arith.mulf %142, %118 : vector<8x128xf32>
    %154 = arith.mulf %134, %144 : vector<8x128xf32>
    %155 = arith.addf %153, %154 : vector<8x128xf32>
    %156 = math.tanh %155 : vector<8x128xf32>
    %157 = arith.mulf %152, %156 : vector<8x128xf32>
    %c4_i32 = arith.constant 4 : i32
    %158 = arith.index_cast %c4_i32 : i32 to index
    %c0_66 = arith.constant 0 : index
    %c0_67 = arith.constant 0 : index
    %159 = vector.load %arg7[%158, %c0_66, %c0_67] : memref<8x8x512xf32, #tpu.memory_space<vmem>>, vector<1x8x512xf32>
    %160 = vector.shape_cast %159 : vector<1x8x512xf32> to vector<8x512xf32>
    %c0_68 = arith.constant 0 : index
    %c0_69 = arith.constant 0 : index
    %161 = vector.load %arg2[%c0_68, %c0_69] : memref<128x512xf32, #tpu.memory_space<vmem>>, vector<128x512xf32>
    %cst_70 = arith.constant dense<0.000000e+00> : vector<8x512xf32>
    %162 = tpu.matmul %157, %161, %cst_70 {dimension_numbers = #tpu.dot_dimension_numbers<[1], [0], [0], [1], [0, 0, 1, 1], [], []>} : vector<8x128xf32>, vector<128x512xf32>, vector<8x512xf32> -> vector<8x512xf32>
    %163 = arith.addf %160, %162 : vector<8x512xf32>
    %164 = vector.extract_strided_slice %163 {offsets = [0, 0], sizes = [8, 128], strides = [1, 1]} : vector<8x512xf32> to vector<8x128xf32>
    %cst_71 = arith.constant 5.000000e-01 : f32
    %165 = vector.broadcast %cst_71 : f32 to vector<8x128xf32>
    %166 = arith.mulf %165, %164 : vector<8x128xf32>
    %167 = math.tanh %166 : vector<8x128xf32>
    %cst_72 = arith.constant 5.000000e-01 : f32
    %168 = vector.broadcast %cst_72 : f32 to vector<8x128xf32>
    %169 = arith.mulf %168, %167 : vector<8x128xf32>
    %cst_73 = arith.constant 5.000000e-01 : f32
    %170 = vector.broadcast %cst_73 : f32 to vector<8x128xf32>
    %171 = arith.addf %169, %170 : vector<8x128xf32>
    %172 = vector.extract_strided_slice %163 {offsets = [0, 128], sizes = [8, 128], strides = [1, 1]} : vector<8x512xf32> to vector<8x128xf32>
    %cst_74 = arith.constant 5.000000e-01 : f32
    %173 = vector.broadcast %cst_74 : f32 to vector<8x128xf32>
    %174 = arith.mulf %173, %172 : vector<8x128xf32>
    %175 = math.tanh %174 : vector<8x128xf32>
    %cst_75 = arith.constant 5.000000e-01 : f32
    %176 = vector.broadcast %cst_75 : f32 to vector<8x128xf32>
    %177 = arith.mulf %176, %175 : vector<8x128xf32>
    %cst_76 = arith.constant 5.000000e-01 : f32
    %178 = vector.broadcast %cst_76 : f32 to vector<8x128xf32>
    %179 = arith.addf %177, %178 : vector<8x128xf32>
    %180 = vector.extract_strided_slice %163 {offsets = [0, 256], sizes = [8, 128], strides = [1, 1]} : vector<8x512xf32> to vector<8x128xf32>
    %181 = math.tanh %180 : vector<8x128xf32>
    %182 = vector.extract_strided_slice %163 {offsets = [0, 384], sizes = [8, 128], strides = [1, 1]} : vector<8x512xf32> to vector<8x128xf32>
    %cst_77 = arith.constant 5.000000e-01 : f32
    %183 = vector.broadcast %cst_77 : f32 to vector<8x128xf32>
    %184 = arith.mulf %183, %182 : vector<8x128xf32>
    %185 = math.tanh %184 : vector<8x128xf32>
    %cst_78 = arith.constant 5.000000e-01 : f32
    %186 = vector.broadcast %cst_78 : f32 to vector<8x128xf32>
    %187 = arith.mulf %186, %185 : vector<8x128xf32>
    %cst_79 = arith.constant 5.000000e-01 : f32
    %188 = vector.broadcast %cst_79 : f32 to vector<8x128xf32>
    %189 = arith.addf %187, %188 : vector<8x128xf32>
    %190 = arith.mulf %179, %155 : vector<8x128xf32>
    %191 = arith.mulf %171, %181 : vector<8x128xf32>
    %192 = arith.addf %190, %191 : vector<8x128xf32>
    %193 = math.tanh %192 : vector<8x128xf32>
    %194 = arith.mulf %189, %193 : vector<8x128xf32>
    %c5_i32 = arith.constant 5 : i32
    %195 = arith.index_cast %c5_i32 : i32 to index
    %c0_80 = arith.constant 0 : index
    %c0_81 = arith.constant 0 : index
    %196 = vector.load %arg7[%195, %c0_80, %c0_81] : memref<8x8x512xf32, #tpu.memory_space<vmem>>, vector<1x8x512xf32>
    %197 = vector.shape_cast %196 : vector<1x8x512xf32> to vector<8x512xf32>
    %c0_82 = arith.constant 0 : index
    %c0_83 = arith.constant 0 : index
    %198 = vector.load %arg2[%c0_82, %c0_83] : memref<128x512xf32, #tpu.memory_space<vmem>>, vector<128x512xf32>
    %cst_84 = arith.constant dense<0.000000e+00> : vector<8x512xf32>
    %199 = tpu.matmul %194, %198, %cst_84 {dimension_numbers = #tpu.dot_dimension_numbers<[1], [0], [0], [1], [0, 0, 1, 1], [], []>} : vector<8x128xf32>, vector<128x512xf32>, vector<8x512xf32> -> vector<8x512xf32>
    %200 = arith.addf %197, %199 : vector<8x512xf32>
    %201 = vector.extract_strided_slice %200 {offsets = [0, 0], sizes = [8, 128], strides = [1, 1]} : vector<8x512xf32> to vector<8x128xf32>
    %cst_85 = arith.constant 5.000000e-01 : f32
    %202 = vector.broadcast %cst_85 : f32 to vector<8x128xf32>
    %203 = arith.mulf %202, %201 : vector<8x128xf32>
    %204 = math.tanh %203 : vector<8x128xf32>
    %cst_86 = arith.constant 5.000000e-01 : f32
    %205 = vector.broadcast %cst_86 : f32 to vector<8x128xf32>
    %206 = arith.mulf %205, %204 : vector<8x128xf32>
    %cst_87 = arith.constant 5.000000e-01 : f32
    %207 = vector.broadcast %cst_87 : f32 to vector<8x128xf32>
    %208 = arith.addf %206, %207 : vector<8x128xf32>
    %209 = vector.extract_strided_slice %200 {offsets = [0, 128], sizes = [8, 128], strides = [1, 1]} : vector<8x512xf32> to vector<8x128xf32>
    %cst_88 = arith.constant 5.000000e-01 : f32
    %210 = vector.broadcast %cst_88 : f32 to vector<8x128xf32>
    %211 = arith.mulf %210, %209 : vector<8x128xf32>
    %212 = math.tanh %211 : vector<8x128xf32>
    %cst_89 = arith.constant 5.000000e-01 : f32
    %213 = vector.broadcast %cst_89 : f32 to vector<8x128xf32>
    %214 = arith.mulf %213, %212 : vector<8x128xf32>
    %cst_90 = arith.constant 5.000000e-01 : f32
    %215 = vector.broadcast %cst_90 : f32 to vector<8x128xf32>
    %216 = arith.addf %214, %215 : vector<8x128xf32>
    %217 = vector.extract_strided_slice %200 {offsets = [0, 256], sizes = [8, 128], strides = [1, 1]} : vector<8x512xf32> to vector<8x128xf32>
    %218 = math.tanh %217 : vector<8x128xf32>
    %219 = vector.extract_strided_slice %200 {offsets = [0, 384], sizes = [8, 128], strides = [1, 1]} : vector<8x512xf32> to vector<8x128xf32>
    %cst_91 = arith.constant 5.000000e-01 : f32
    %220 = vector.broadcast %cst_91 : f32 to vector<8x128xf32>
    %221 = arith.mulf %220, %219 : vector<8x128xf32>
    %222 = math.tanh %221 : vector<8x128xf32>
    %cst_92 = arith.constant 5.000000e-01 : f32
    %223 = vector.broadcast %cst_92 : f32 to vector<8x128xf32>
    %224 = arith.mulf %223, %222 : vector<8x128xf32>
    %cst_93 = arith.constant 5.000000e-01 : f32
    %225 = vector.broadcast %cst_93 : f32 to vector<8x128xf32>
    %226 = arith.addf %224, %225 : vector<8x128xf32>
    %227 = arith.mulf %216, %192 : vector<8x128xf32>
    %228 = arith.mulf %208, %218 : vector<8x128xf32>
    %229 = arith.addf %227, %228 : vector<8x128xf32>
    %230 = math.tanh %229 : vector<8x128xf32>
    %231 = arith.mulf %226, %230 : vector<8x128xf32>
    %c6_i32 = arith.constant 6 : i32
    %232 = arith.index_cast %c6_i32 : i32 to index
    %c0_94 = arith.constant 0 : index
    %c0_95 = arith.constant 0 : index
    %233 = vector.load %arg7[%232, %c0_94, %c0_95] : memref<8x8x512xf32, #tpu.memory_space<vmem>>, vector<1x8x512xf32>
    %234 = vector.shape_cast %233 : vector<1x8x512xf32> to vector<8x512xf32>
    %c0_96 = arith.constant 0 : index
    %c0_97 = arith.constant 0 : index
    %235 = vector.load %arg2[%c0_96, %c0_97] : memref<128x512xf32, #tpu.memory_space<vmem>>, vector<128x512xf32>
    %cst_98 = arith.constant dense<0.000000e+00> : vector<8x512xf32>
    %236 = tpu.matmul %231, %235, %cst_98 {dimension_numbers = #tpu.dot_dimension_numbers<[1], [0], [0], [1], [0, 0, 1, 1], [], []>} : vector<8x128xf32>, vector<128x512xf32>, vector<8x512xf32> -> vector<8x512xf32>
    %237 = arith.addf %234, %236 : vector<8x512xf32>
    %238 = vector.extract_strided_slice %237 {offsets = [0, 0], sizes = [8, 128], strides = [1, 1]} : vector<8x512xf32> to vector<8x128xf32>
    %cst_99 = arith.constant 5.000000e-01 : f32
    %239 = vector.broadcast %cst_99 : f32 to vector<8x128xf32>
    %240 = arith.mulf %239, %238 : vector<8x128xf32>
    %241 = math.tanh %240 : vector<8x128xf32>
    %cst_100 = arith.constant 5.000000e-01 : f32
    %242 = vector.broadcast %cst_100 : f32 to vector<8x128xf32>
    %243 = arith.mulf %242, %241 : vector<8x128xf32>
    %cst_101 = arith.constant 5.000000e-01 : f32
    %244 = vector.broadcast %cst_101 : f32 to vector<8x128xf32>
    %245 = arith.addf %243, %244 : vector<8x128xf32>
    %246 = vector.extract_strided_slice %237 {offsets = [0, 128], sizes = [8, 128], strides = [1, 1]} : vector<8x512xf32> to vector<8x128xf32>
    %cst_102 = arith.constant 5.000000e-01 : f32
    %247 = vector.broadcast %cst_102 : f32 to vector<8x128xf32>
    %248 = arith.mulf %247, %246 : vector<8x128xf32>
    %249 = math.tanh %248 : vector<8x128xf32>
    %cst_103 = arith.constant 5.000000e-01 : f32
    %250 = vector.broadcast %cst_103 : f32 to vector<8x128xf32>
    %251 = arith.mulf %250, %249 : vector<8x128xf32>
    %cst_104 = arith.constant 5.000000e-01 : f32
    %252 = vector.broadcast %cst_104 : f32 to vector<8x128xf32>
    %253 = arith.addf %251, %252 : vector<8x128xf32>
    %254 = vector.extract_strided_slice %237 {offsets = [0, 256], sizes = [8, 128], strides = [1, 1]} : vector<8x512xf32> to vector<8x128xf32>
    %255 = math.tanh %254 : vector<8x128xf32>
    %256 = vector.extract_strided_slice %237 {offsets = [0, 384], sizes = [8, 128], strides = [1, 1]} : vector<8x512xf32> to vector<8x128xf32>
    %cst_105 = arith.constant 5.000000e-01 : f32
    %257 = vector.broadcast %cst_105 : f32 to vector<8x128xf32>
    %258 = arith.mulf %257, %256 : vector<8x128xf32>
    %259 = math.tanh %258 : vector<8x128xf32>
    %cst_106 = arith.constant 5.000000e-01 : f32
    %260 = vector.broadcast %cst_106 : f32 to vector<8x128xf32>
    %261 = arith.mulf %260, %259 : vector<8x128xf32>
    %cst_107 = arith.constant 5.000000e-01 : f32
    %262 = vector.broadcast %cst_107 : f32 to vector<8x128xf32>
    %263 = arith.addf %261, %262 : vector<8x128xf32>
    %264 = arith.mulf %253, %229 : vector<8x128xf32>
    %265 = arith.mulf %245, %255 : vector<8x128xf32>
    %266 = arith.addf %264, %265 : vector<8x128xf32>
    %267 = math.tanh %266 : vector<8x128xf32>
    %268 = arith.mulf %263, %267 : vector<8x128xf32>
    %c7_i32 = arith.constant 7 : i32
    %269 = arith.index_cast %c7_i32 : i32 to index
    %c0_108 = arith.constant 0 : index
    %c0_109 = arith.constant 0 : index
    %270 = vector.load %arg7[%269, %c0_108, %c0_109] : memref<8x8x512xf32, #tpu.memory_space<vmem>>, vector<1x8x512xf32>
    %271 = vector.shape_cast %270 : vector<1x8x512xf32> to vector<8x512xf32>
    %c0_110 = arith.constant 0 : index
    %c0_111 = arith.constant 0 : index
    %272 = vector.load %arg2[%c0_110, %c0_111] : memref<128x512xf32, #tpu.memory_space<vmem>>, vector<128x512xf32>
    %cst_112 = arith.constant dense<0.000000e+00> : vector<8x512xf32>
    %273 = tpu.matmul %268, %272, %cst_112 {dimension_numbers = #tpu.dot_dimension_numbers<[1], [0], [0], [1], [0, 0, 1, 1], [], []>} : vector<8x128xf32>, vector<128x512xf32>, vector<8x512xf32> -> vector<8x512xf32>
    %274 = arith.addf %271, %273 : vector<8x512xf32>
    %275 = vector.extract_strided_slice %274 {offsets = [0, 0], sizes = [8, 128], strides = [1, 1]} : vector<8x512xf32> to vector<8x128xf32>
    %cst_113 = arith.constant 5.000000e-01 : f32
    %276 = vector.broadcast %cst_113 : f32 to vector<8x128xf32>
    %277 = arith.mulf %276, %275 : vector<8x128xf32>
    %278 = math.tanh %277 : vector<8x128xf32>
    %cst_114 = arith.constant 5.000000e-01 : f32
    %279 = vector.broadcast %cst_114 : f32 to vector<8x128xf32>
    %280 = arith.mulf %279, %278 : vector<8x128xf32>
    %cst_115 = arith.constant 5.000000e-01 : f32
    %281 = vector.broadcast %cst_115 : f32 to vector<8x128xf32>
    %282 = arith.addf %280, %281 : vector<8x128xf32>
    %283 = vector.extract_strided_slice %274 {offsets = [0, 128], sizes = [8, 128], strides = [1, 1]} : vector<8x512xf32> to vector<8x128xf32>
    %cst_116 = arith.constant 5.000000e-01 : f32
    %284 = vector.broadcast %cst_116 : f32 to vector<8x128xf32>
    %285 = arith.mulf %284, %283 : vector<8x128xf32>
    %286 = math.tanh %285 : vector<8x128xf32>
    %cst_117 = arith.constant 5.000000e-01 : f32
    %287 = vector.broadcast %cst_117 : f32 to vector<8x128xf32>
    %288 = arith.mulf %287, %286 : vector<8x128xf32>
    %cst_118 = arith.constant 5.000000e-01 : f32
    %289 = vector.broadcast %cst_118 : f32 to vector<8x128xf32>
    %290 = arith.addf %288, %289 : vector<8x128xf32>
    %291 = vector.extract_strided_slice %274 {offsets = [0, 256], sizes = [8, 128], strides = [1, 1]} : vector<8x512xf32> to vector<8x128xf32>
    %292 = math.tanh %291 : vector<8x128xf32>
    %293 = vector.extract_strided_slice %274 {offsets = [0, 384], sizes = [8, 128], strides = [1, 1]} : vector<8x512xf32> to vector<8x128xf32>
    %cst_119 = arith.constant 5.000000e-01 : f32
    %294 = vector.broadcast %cst_119 : f32 to vector<8x128xf32>
    %295 = arith.mulf %294, %293 : vector<8x128xf32>
    %296 = math.tanh %295 : vector<8x128xf32>
    %cst_120 = arith.constant 5.000000e-01 : f32
    %297 = vector.broadcast %cst_120 : f32 to vector<8x128xf32>
    %298 = arith.mulf %297, %296 : vector<8x128xf32>
    %cst_121 = arith.constant 5.000000e-01 : f32
    %299 = vector.broadcast %cst_121 : f32 to vector<8x128xf32>
    %300 = arith.addf %298, %299 : vector<8x128xf32>
    %301 = arith.mulf %290, %266 : vector<8x128xf32>
    %302 = arith.mulf %282, %292 : vector<8x128xf32>
    %303 = arith.addf %301, %302 : vector<8x128xf32>
    %304 = math.tanh %303 : vector<8x128xf32>
    %305 = arith.mulf %300, %304 : vector<8x128xf32>
    %c8_i32 = arith.constant 8 : i32
    %c0_122 = arith.constant 0 : index
    %c0_123 = arith.constant 0 : index
    %306 = vector.load %arg4[%c0_122, %c0_123] : memref<1x128xf32, #tpu.memory_space<vmem>>, vector<1x128xf32>
    %307 = vector.broadcast %306 : vector<1x128xf32> to vector<8x128xf32>
    %308 = arith.mulf %305, %307 : vector<8x128xf32>
    %cst_124 = arith.constant dense<0.000000e+00> : vector<8xf32>
    %309 = vector.multi_reduction <add>, %308, %cst_124 [1] : vector<8x128xf32> to vector<8xf32>
    %310 = vector.shape_cast %309 : vector<8xf32> to vector<8x1xf32>
    %c0_125 = arith.constant 0 : index
    %c0_126 = arith.constant 0 : index
    %311 = vector.load %arg5[%c0_125, %c0_126] : memref<1x1xf32, #tpu.memory_space<vmem>>, vector<1x1xf32>
    %312 = vector.broadcast %311 : vector<1x1xf32> to vector<8x1xf32>
    %313 = arith.addf %310, %312 : vector<8x1xf32>
    %cst_127 = arith.constant 5.000000e-01 : f32
    %314 = vector.broadcast %cst_127 : f32 to vector<8x1xf32>
    %315 = arith.mulf %314, %313 : vector<8x1xf32>
    %316 = math.tanh %315 : vector<8x1xf32>
    %cst_128 = arith.constant 5.000000e-01 : f32
    %317 = vector.broadcast %cst_128 : f32 to vector<8x1xf32>
    %318 = arith.mulf %317, %316 : vector<8x1xf32>
    %cst_129 = arith.constant 5.000000e-01 : f32
    %319 = vector.broadcast %cst_129 : f32 to vector<8x1xf32>
    %320 = arith.addf %318, %319 : vector<8x1xf32>
    %321 = vector.shape_cast %320 : vector<8x1xf32> to vector<8x1xf32>
    %322 = vector.broadcast %321 : vector<8x1xf32> to vector<8x128xf32>
    %c0_130 = arith.constant 0 : index
    %c0_131 = arith.constant 0 : index
    %323 = vector.load %arg6[%c0_130, %c0_131] : memref<8x128xf32, #tpu.memory_space<vmem>>, vector<8x128xf32>
    tpu.vector_store %arg6[%c0_130, %c0_131], %322 {strides = array<i32>} : memref<8x128xf32, #tpu.memory_space<vmem>>, vector<8x128xf32>,
    return
  }
}

</mosaic_0001>

<llo_original>
// kernel: tpu_custom_call.1
$region0: #{tpu_custom_call.1}
  #allocation0 [shape = 'u32[]', space=smem, size = 0x4, offset = 0x4, fixed_abs, tag = 'smem constant byte address 0x4 - core index']
  #allocation1 [shape = 'u32[144,128]{1,0:T(1,128)}', space=vmem, size = 0x12000, scoped, tag = 'internal scratch']
  #allocation2 [shape = 'f32[8,8,512]{2,1,0:T(8,128)}', space=vmem, size = 0x20000, scoped, tag = 'scratch operand']
  #allocation3 [shape = 'f32[1,1]{1,0:T(1,128)S(1)}', space=vmem, size = 0x200, scoped, tag = 'scoped memory for tpu_custom_call.1']
  %s0 = inlined_call_operand.vmem [shape: f32[64,16], index: 0, kind: input, shape index: {}]
  %s1 = inlined_call_operand.vmem [shape: f32[16,512], index: 1, kind: input, shape index: {}]
  %s2 = inlined_call_operand.hbm [shape: f32[128,512], index: 2, kind: input, shape index: {}]
  %s3 = inlined_call_operand.vmem [shape: f32[1,512], index: 3, kind: input, shape index: {}]
  %s4 = inlined_call_operand.vmem [shape: f32[1,128], index: 4, kind: input, shape index: {}]
  %s5 = inlined_call_operand.<no memory space> [shape: f32[1,1], index: 5, kind: input, shape index: {}]
  %s6 = inlined_call_operand.hbm [shape: f32[8,128], index: 6, kind: output, shape index: {}]
  %s7 = sld [smem:[#allocation0]]
  $region38: #{tpu_custom_call.1} parent=0
    _
  %s9 = ssub.s32 1, %s7
  %s10 = scalar_select 0, %s9, %s7
  %v11 = vstv %s5
  %12 = vst [vmem:[#allocation3] sm:$0x1] %v11
  $region1: #{tpu_custom_call.1} parent=0
    #allocation4 [shape = 'u8[262144]{0}', space=vmem, size = 0x40000, scoped, tag = 'input window, operand 2, single buffered']
    #allocation5 [shape = 's32[1]{0}', space=sflag, size = 0x4, scoped, tag = 'scoped memory for tpu_custom_call.1']
    #allocation6 [shape = 's32[1]{0}', space=sflag, size = 0x4, scoped, tag = 'scoped memory for tpu_custom_call.1']
    #allocation7 [shape = 'u8[4096]{0}', space=vmem, size = 0x1000, scoped, tag = 'output window, operand 0, single buffered']
    %13 = vsyncpa [#allocation5], 0
    %14 = vsyncpa [#allocation6], 0
    // Predicated region
    $region2: #{tpu_custom_call.1} parent=1 // pred_check
      _
    $region3: #{tpu_custom_call.1} parent=1 // pred_check_branch
      %16 = sbr.rel (0) target = $region5
    $region4: #{tpu_custom_call.1} parent=1 // pred_region
      _
    $region5: #{tpu_custom_call.1} parent=1 // pred_fallthru
      _
    // Predicated region
    $region6: #{tpu_custom_call.1} parent=1 // pred_check
      _
    $region7: #{tpu_custom_call.1} parent=1 // pred_check_branch
      %18 = sbr.rel (0) target = $region9
    $region8: #{tpu_custom_call.1} parent=1 // pred_region
      _
    $region9: #{tpu_custom_call.1} parent=1 // pred_fallthru
      _
    // Predicated region
    $region10: #{tpu_custom_call.1} parent=1 // pred_check
      _
    $region11: #{tpu_custom_call.1} parent=1 // pred_check_branch
      %20 = sbr.rel (0) target = $region13
    $region12: #{tpu_custom_call.1} parent=1 // pred_region
      %s22 = ssub.s32 8192, 8192
      %23 = vsyncadd [#allocation5], %s22
      %s24 = sshll.u32 [#allocation4], 4
      %s25 = int_to_ptr.vmem [resolvable:$true] %s24
      %30 = dma.hbm_to_vmem [thread:$0]  %s2, 8192, %s25, [#allocation5], 512, 512, 32
    $region13: #{tpu_custom_call.1} parent=1 // pred_fallthru
      _
    // Predicated region
    $region14: #{tpu_custom_call.1} parent=1 // pred_check
      _
    $region15: #{tpu_custom_call.1} parent=1 // pred_check_branch
      %32 = sbr.rel (0) target = $region17
    $region16: #{tpu_custom_call.1} parent=1 // pred_region
      _
    $region17: #{tpu_custom_call.1} parent=1 // pred_fallthru
      _
    // Predicated region
    $region18: #{tpu_custom_call.1} parent=1 // pred_check
      _
    $region19: #{tpu_custom_call.1} parent=1 // pred_check_branch
      %34 = sbr.rel (0) target = $region21
    $region20: #{tpu_custom_call.1} parent=1 // pred_region
      _
    $region21: #{tpu_custom_call.1} parent=1 // pred_fallthru
      _
    // Predicated region
    $region22: #{tpu_custom_call.1} parent=1 // pred_check
      _
    $region23: #{tpu_custom_call.1} parent=1 // pred_check_branch
      %36 = sbr.rel (0) target = $region25
    $region24: #{tpu_custom_call.1} parent=1 // pred_region
      _
    $region25: #{tpu_custom_call.1} parent=1 // pred_fallthru
      _
    // Predicated region
    $region26: #{tpu_custom_call.1} parent=1 // pred_check
      _
    $region27: #{tpu_custom_call.1} parent=1 // pred_check_branch
      %38 = sbr.rel (0) target = $region29
    $region28: #{tpu_custom_call.1} parent=1 // pred_region
      %39 = dma.done [#allocation5], 8192
    $region29: #{tpu_custom_call.1} parent=1 // pred_fallthru
      _
    %v40 = vld [vmem:[%s0] sm:$0xff]
    %v41 = vld [vmem:[%s0 + $0x8] sm:$0xff]
    %v42 = vld [vmem:[%s0 + $0x10] sm:$0xff]
    %v43 = vld [vmem:[%s0 + $0x18] sm:$0xff]
    %v44 = vld [vmem:[%s0 + $0x20] sm:$0xff]
    %v45 = vld [vmem:[%s0 + $0x28] sm:$0xff]
    %v46 = vld [vmem:[%s0 + $0x30] sm:$0xff]
    %v47 = vld [vmem:[%s0 + $0x38] sm:$0xff]
    %v48 = vld [vmem:[%s1] sm:$0xff]
    %v49 = vld [vmem:[%s1 + $0x8] sm:$0xff]
    %v50 = vld [vmem:[%s1 + $0x10] sm:$0xff]
    %v51 = vld [vmem:[%s1 + $0x18] sm:$0xff]
    %v52 = vld [vmem:[%s1 + $0x20] sm:$0xff]
    %v53 = vld [vmem:[%s1 + $0x28] sm:$0xff]
    %v54 = vld [vmem:[%s1 + $0x30] sm:$0xff]
    %v55 = vld [vmem:[%s1 + $0x38] sm:$0xff]
    %v56 = vld [vmem:[%s3] sm:$0xf]
    %v58 = vlaneseq
    %v59 = vshrl.u32 %v58, 7
    %v60 = vsub.s32 0, %v59
    %v61 = vrot.slane %v56, %v60
    %v62 = vlaneseq
    %v63 = vshrl.u32 %v62, 7
    %v64 = vsub.s32 1, %v63
    %v65 = vrot.slane %v56, %v64
    %v66 = vlaneseq
    %v67 = vshrl.u32 %v66, 7
    %v68 = vsub.s32 2, %v67
    %v69 = vrot.slane %v56, %v68
    %v70 = vlaneseq
    %v71 = vshrl.u32 %v70, 7
    %v72 = vsub.s32 3, %v71
    %v73 = vrot.slane %v56, %v72
    %vm78 = vcmask 130048
    %v80 = vsel %vm78, %v40, 0
    %v83 = vsel %vm78, %v41, 0
    %v86 = vsel %vm78, %v42, 0
    %v89 = vsel %vm78, %v43, 0
    %v92 = vsel %vm78, %v44, 0
    %v95 = vsel %vm78, %v45, 0
    %v98 = vsel %vm78, %v46, 0
    %v101 = vsel %vm78, %v47, 0
    %103 = vmatprep.subr.mxu0 0.0
    %104 = vmatpush1.msra.mxu0 0.0
    %105 = vmatprep.subr.mxu0 0.0
    %106 = vmatpush1.msra.mxu0 0.0
    %107 = vmatprep.subr.mxu0 0.0
    %108 = vmatpush1.msra.mxu0 0.0
    %109 = vmatprep.subr.mxu0 0.0
    %110 = vmatpush1.msra.mxu0 0.0
    %111 = vmatprep.subr.mxu0 0.0
    %112 = vmatpush1.msra.mxu0 0.0
    %113 = vmatprep.subr.mxu0 0.0
    %114 = vmatpush1.msra.mxu0 0.0
    %115 = vmatprep.subr.mxu0 0.0
    %116 = vmatpush1.msra.mxu0 0.0
    %117 = vmatprep.subr.mxu0 0.0
    %118 = vmatpush1.msra.mxu0 0.0
    %119 = vmatprep.subr.mxu0 0.0
    %120 = vmatpush1.msra.mxu0 0.0
    %121 = vmatprep.subr.mxu0 0.0
    %122 = vmatpush1.msra.mxu0 0.0
    %123 = vmatprep.subr.mxu0 0.0
    %124 = vmatpush1.msra.mxu0 0.0
    %125 = vmatprep.subr.mxu0 0.0
    %126 = vmatpush1.msra.mxu0 0.0
    %127 = vmatprep.subr.mxu0 0.0
    %128 = vmatpush1.msra.mxu0 0.0
    %129 = vmatprep.subr.mxu0 0.0
    %130 = vmatpush1.msra.mxu0 0.0
    %131 = vmatprep.subr.mxu0 %v53
    %132 = vmatpush1.msra.mxu0 %v52
    %133 = vmatprep.subr.mxu0 %v49
    %134 = vmatpush1.msra.mxu0 %v48
    %135 = vmatprep.subr.mxu0 0.0
    %136 = vmatpush2.msra.mxu0 0.0
    %137 = vmatprep.subr.mxu0 0.0
    %138 = vmatpush2.msra.mxu0 0.0
    %139 = vmatprep.subr.mxu0 0.0
    %140 = vmatpush2.msra.mxu0 0.0
    %141 = vmatprep.subr.mxu0 0.0
    %142 = vmatpush2.msra.mxu0 0.0
    %143 = vmatprep.subr.mxu0 0.0
    %144 = vmatpush2.msra.mxu0 0.0
    %145 = vmatprep.subr.mxu0 0.0
    %146 = vmatpush2.msra.mxu0 0.0
    %147 = vmatprep.subr.mxu0 0.0
    %148 = vmatpush2.msra.mxu0 0.0
    %149 = vmatprep.subr.mxu0 0.0
    %150 = vmatpush2.msra.mxu0 0.0
    %151 = vmatprep.subr.mxu0 0.0
    %152 = vmatpush2.msra.mxu0 0.0
    %153 = vmatprep.subr.mxu0 0.0
    %154 = vmatpush2.msra.mxu0 0.0
    %155 = vmatprep.subr.mxu0 0.0
    %156 = vmatpush2.msra.mxu0 0.0
    %157 = vmatprep.subr.mxu0 0.0
    %158 = vmatpush2.msra.mxu0 0.0
    %159 = vmatprep.subr.mxu0 0.0
    %160 = vmatpush2.msra.mxu0 0.0
    %161 = vmatprep.subr.mxu0 0.0
    %162 = vmatpush2.msra.mxu0 0.0
    %163 = vmatprep.subr.mxu0 0.0
    %164 = vmatpush2.msra.mxu0 0.0
    %165 = vmatprep.subr.mxu0 0.0
    %166 = vmatpush2.msra.mxu0 0.0
    %167 = vmatprep.mubr.f32.mxu0 0.0
    %168 = vmatmul.mubr.f32.gmra.mxu0 %v80
    %v169 = vpop.f32.mrf.mxu0
    %v170 = vadd.f32 %v61, %v169
    %v171 = vpop.f32.mrf.mxu0
    %v172 = vadd.f32 %v65, %v171
    %173 = vmatprep.mubr.f32.mxu0 0.0
    %174 = vmatmul.mubr.f32.gmra.mxu0 %v83
    %v175 = vpop.f32.mrf.mxu0
    %v176 = vadd.f32 %v61, %v175
    %v177 = vpop.f32.mrf.mxu0
    %v178 = vadd.f32 %v65, %v177
    %179 = vmatprep.mubr.f32.mxu0 0.0
    %180 = vmatmul.mubr.f32.gmra.mxu0 %v86
    %v181 = vpop.f32.mrf.mxu0
    %v182 = vadd.f32 %v61, %v181
    %v183 = vpop.f32.mrf.mxu0
    %v184 = vadd.f32 %v65, %v183
    %185 = vmatprep.mubr.f32.mxu0 0.0
    %186 = vmatmul.mubr.f32.gmra.mxu0 %v89
    %v187 = vpop.f32.mrf.mxu0
    %v188 = vadd.f32 %v61, %v187
    %v189 = vpop.f32.mrf.mxu0
    %v190 = vadd.f32 %v65, %v189
    %191 = vmatprep.mubr.f32.mxu0 0.0
    %192 = vmatmul.mubr.f32.gmra.mxu0 %v92
    %v193 = vpop.f32.mrf.mxu0
    %v194 = vadd.f32 %v61, %v193
    %v195 = vpop.f32.mrf.mxu0
    %v196 = vadd.f32 %v65, %v195
    %197 = vmatprep.mubr.f32.mxu0 0.0
    %198 = vmatmul.mubr.f32.gmra.mxu0 %v95
    %v199 = vpop.f32.mrf.mxu0
    %v200 = vadd.f32 %v61, %v199
    %v201 = vpop.f32.mrf.mxu0
    %v202 = vadd.f32 %v65, %v201
    %203 = vmatprep.mubr.f32.mxu0 0.0
    %204 = vmatmul.mubr.f32.gmra.mxu0 %v98
    %v205 = vpop.f32.mrf.mxu0
    %v206 = vadd.f32 %v61, %v205
    %v207 = vpop.f32.mrf.mxu0
    %v208 = vadd.f32 %v65, %v207
    %209 = vmatprep.mubr.f32.mxu0 0.0
    %210 = vmatmul.mubr.f32.gmra.mxu0 %v101
    %v211 = vpop.f32.mrf.mxu0
    %v212 = vadd.f32 %v61, %v211
    %v213 = vpop.f32.mrf.mxu0
    %v214 = vadd.f32 %v65, %v213
    %215 = vdwg.mxu0
    %216 = vmatprep.subr.mxu0 0.0
    %217 = vmatpush1.msra.mxu0 0.0
    %218 = vmatprep.subr.mxu0 0.0
    %219 = vmatpush1.msra.mxu0 0.0
    %220 = vmatprep.subr.mxu0 0.0
    %221 = vmatpush1.msra.mxu0 0.0
    %222 = vmatprep.subr.mxu0 0.0
    %223 = vmatpush1.msra.mxu0 0.0
    %224 = vmatprep.subr.mxu0 0.0
    %225 = vmatpush1.msra.mxu0 0.0
    %226 = vmatprep.subr.mxu0 0.0
    %227 = vmatpush1.msra.mxu0 0.0
    %228 = vmatprep.subr.mxu0 0.0
    %229 = vmatpush1.msra.mxu0 0.0
    %230 = vmatprep.subr.mxu0 0.0
    %231 = vmatpush1.msra.mxu0 0.0
    %232 = vmatprep.subr.mxu0 0.0
    %233 = vmatpush1.msra.mxu0 0.0
    %234 = vmatprep.subr.mxu0 0.0
    %235 = vmatpush1.msra.mxu0 0.0
    %236 = vmatprep.subr.mxu0 0.0
    %237 = vmatpush1.msra.mxu0 0.0
    %238 = vmatprep.subr.mxu0 0.0
    %239 = vmatpush1.msra.mxu0 0.0
    %240 = vmatprep.subr.mxu0 0.0
    %241 = vmatpush1.msra.mxu0 0.0
    %242 = vmatprep.subr.mxu0 0.0
    %243 = vmatpush1.msra.mxu0 0.0
    %244 = vmatprep.subr.mxu0 %v55
    %245 = vmatpush1.msra.mxu0 %v54
    %246 = vmatprep.subr.mxu0 %v51
    %247 = vmatpush1.msra.mxu0 %v50
    %248 = vmatprep.subr.mxu0 0.0
    %249 = vmatpush2.msra.mxu0 0.0
    %250 = vmatprep.subr.mxu0 0.0
    %251 = vmatpush2.msra.mxu0 0.0
    %252 = vmatprep.subr.mxu0 0.0
    %253 = vmatpush2.msra.mxu0 0.0
    %254 = vmatprep.subr.mxu0 0.0
    %255 = vmatpush2.msra.mxu0 0.0
    %256 = vmatprep.subr.mxu0 0.0
    %257 = vmatpush2.msra.mxu0 0.0
    %258 = vmatprep.subr.mxu0 0.0
    %259 = vmatpush2.msra.mxu0 0.0
    %260 = vmatprep.subr.mxu0 0.0
    %261 = vmatpush2.msra.mxu0 0.0
    %262 = vmatprep.subr.mxu0 0.0
    %263 = vmatpush2.msra.mxu0 0.0
    %264 = vmatprep.subr.mxu0 0.0
    %265 = vmatpush2.msra.mxu0 0.0
    %266 = vmatprep.subr.mxu0 0.0
    %267 = vmatpush2.msra.mxu0 0.0
    %268 = vmatprep.subr.mxu0 0.0
    %269 = vmatpush2.msra.mxu0 0.0
    %270 = vmatprep.subr.mxu0 0.0
    %271 = vmatpush2.msra.mxu0 0.0
    %272 = vmatprep.subr.mxu0 0.0
    %273 = vmatpush2.msra.mxu0 0.0
    %274 = vmatprep.subr.mxu0 0.0
    %275 = vmatpush2.msra.mxu0 0.0
    %276 = vmatprep.subr.mxu0 0.0
    %277 = vmatpush2.msra.mxu0 0.0
    %278 = vmatprep.subr.mxu0 0.0
    %279 = vmatpush2.msra.mxu0 0.0
    %280 = vmatprep.mubr.f32.mxu0 0.0
    %281 = vmatmul.mubr.f32.gmra.mxu0 %v80
    %v282 = vpop.f32.mrf.mxu0
    %v283 = vadd.f32 %v69, %v282
    %v284 = vpop.f32.mrf.mxu0
    %v285 = vadd.f32 %v73, %v284
    %286 = vmatprep.mubr.f32.mxu0 0.0
    %287 = vmatmul.mubr.f32.gmra.mxu0 %v83
    %v288 = vpop.f32.mrf.mxu0
    %v289 = vadd.f32 %v69, %v288
    %v290 = vpop.f32.mrf.mxu0
    %v291 = vadd.f32 %v73, %v290
    %292 = vmatprep.mubr.f32.mxu0 0.0
    %293 = vmatmul.mubr.f32.gmra.mxu0 %v86
    %v294 = vpop.f32.mrf.mxu0
    %v295 = vadd.f32 %v69, %v294
    %v296 = vpop.f32.mrf.mxu0
    %v297 = vadd.f32 %v73, %v296
    %298 = vmatprep.mubr.f32.mxu0 0.0
    %299 = vmatmul.mubr.f32.gmra.mxu0 %v89
    %v300 = vpop.f32.mrf.mxu0
    %v301 = vadd.f32 %v69, %v300
    %v302 = vpop.f32.mrf.mxu0
    %v303 = vadd.f32 %v73, %v302
    %304 = vmatprep.mubr.f32.mxu0 0.0
    %305 = vmatmul.mubr.f32.gmra.mxu0 %v92
    %v306 = vpop.f32.mrf.mxu0
    %v307 = vadd.f32 %v69, %v306
    %v308 = vpop.f32.mrf.mxu0
    %v309 = vadd.f32 %v73, %v308
    %310 = vmatprep.mubr.f32.mxu0 0.0
    %311 = vmatmul.mubr.f32.gmra.mxu0 %v95
    %v312 = vpop.f32.mrf.mxu0
    %v313 = vadd.f32 %v69, %v312
    %v314 = vpop.f32.mrf.mxu0
    %v315 = vadd.f32 %v73, %v314
    %316 = vmatprep.mubr.f32.mxu0 0.0
    %317 = vmatmul.mubr.f32.gmra.mxu0 %v98
    %v318 = vpop.f32.mrf.mxu0
    %v319 = vadd.f32 %v69, %v318
    %v320 = vpop.f32.mrf.mxu0
    %v321 = vadd.f32 %v73, %v320
    %322 = vmatprep.mubr.f32.mxu0 0.0
    %323 = vmatmul.mubr.f32.gmra.mxu0 %v101
    %v324 = vpop.f32.mrf.mxu0
    %v325 = vadd.f32 %v69, %v324
    %v326 = vpop.f32.mrf.mxu0
    %v327 = vadd.f32 %v73, %v326
    %328 = vdwg.mxu0
    %329 = vst [vmem:[#allocation2] sm:$0xff] %v170
    %330 = vst [vmem:[#allocation2 + $0x8] sm:$0xff] %v172
    %331 = vst [vmem:[#allocation2 + $0x10] sm:$0xff] %v283
    %332 = vst [vmem:[#allocation2 + $0x18] sm:$0xff] %v285
    %333 = vst [vmem:[#allocation2 + $0x20] sm:$0xff] %v176
    %334 = vst [vmem:[#allocation2 + $0x28] sm:$0xff] %v178
    %335 = vst [vmem:[#allocation2 + $0x30] sm:$0xff] %v289
    %336 = vst [vmem:[#allocation2 + $0x38] sm:$0xff] %v291
    %337 = vst [vmem:[#allocation2 + $0x40] sm:$0xff] %v182
    %338 = vst [vmem:[#allocation2 + $0x48] sm:$0xff] %v184
    %339 = vst [vmem:[#allocation2 + $0x50] sm:$0xff] %v295
    %340 = vst [vmem:[#allocation2 + $0x58] sm:$0xff] %v297
    %341 = vst [vmem:[#allocation2 + $0x60] sm:$0xff] %v188
    %342 = vst [vmem:[#allocation2 + $0x68] sm:$0xff] %v190
    %343 = vst [vmem:[#allocation2 + $0x70] sm:$0xff] %v301
    %344 = vst [vmem:[#allocation2 + $0x78] sm:$0xff] %v303
    %345 = vst [vmem:[#allocation2 + $0x80] sm:$0xff] %v194
    %346 = vst [vmem:[#allocation2 + $0x88] sm:$0xff] %v196
    %347 = vst [vmem:[#allocation2 + $0x90] sm:$0xff] %v307
    %348 = vst [vmem:[#allocation2 + $0x98] sm:$0xff] %v309
    %349 = vst [vmem:[#allocation2 + $0xa0] sm:$0xff] %v200
    %350 = vst [vmem:[#allocation2 + $0xa8] sm:$0xff] %v202
    %351 = vst [vmem:[#allocation2 + $0xb0] sm:$0xff] %v313
    %352 = vst [vmem:[#allocation2 + $0xb8] sm:$0xff] %v315
    %353 = vst [vmem:[#allocation2 + $0xc0] sm:$0xff] %v206
    %354 = vst [vmem:[#allocation2 + $0xc8] sm:$0xff] %v208
    %355 = vst [vmem:[#allocation2 + $0xd0] sm:$0xff] %v319
    %356 = vst [vmem:[#allocation2 + $0xd8] sm:$0xff] %v321
    %357 = vst [vmem:[#allocation2 + $0xe0] sm:$0xff] %v212
    %358 = vst [vmem:[#allocation2 + $0xe8] sm:$0xff] %v214
    %359 = vst [vmem:[#allocation2 + $0xf0] sm:$0xff] %v325
    %360 = vst [vmem:[#allocation2 + $0xf8] sm:$0xff] %v327
    %v361 = vld [vmem:[#allocation2] sm:$0xff]
    %v362 = vld [vmem:[#allocation2 + $0x8] sm:$0xff]
    %v363 = vld [vmem:[#allocation2 + $0x10] sm:$0xff]
    %v364 = vld [vmem:[#allocation2 + $0x18] sm:$0xff]
    %v365 = vld [vmem:[#allocation4] sm:$0xff]
    %v366 = vld [vmem:[#allocation4 + $0x8] sm:$0xff]
    %v367 = vld [vmem:[#allocation4 + $0x10] sm:$0xff]
    %v368 = vld [vmem:[#allocation4 + $0x18] sm:$0xff]
    %v369 = vld [vmem:[#allocation4 + $0x20] sm:$0xff]
    %v370 = vld [vmem:[#allocation4 + $0x28] sm:$0xff]
    %v371 = vld [vmem:[#allocation4 + $0x30] sm:$0xff]
    %v372 = vld [vmem:[#allocation4 + $0x38] sm:$0xff]
    %v373 = vld [vmem:[#allocation4 + $0x40] sm:$0xff]
    %v374 = vld [vmem:[#allocation4 + $0x48] sm:$0xff]
    %v375 = vld [vmem:[#allocation4 + $0x50] sm:$0xff]
    %v376 = vld [vmem:[#allocation4 + $0x58] sm:$0xff]
    %v377 = vld [vmem:[#allocation4 + $0x60] sm:$0xff]
    %v378 = vld [vmem:[#allocation4 + $0x68] sm:$0xff]
    %v379 = vld [vmem:[#allocation4 + $0x70] sm:$0xff]
    %v380 = vld [vmem:[#allocation4 + $0x78] sm:$0xff]
    %v381 = vld [vmem:[#allocation4 + $0x80] sm:$0xff]
    %v382 = vld [vmem:[#allocation4 + $0x88] sm:$0xff]
    %v383 = vld [vmem:[#allocation4 + $0x90] sm:$0xff]
    %v384 = vld [vmem:[#allocation4 + $0x98] sm:$0xff]
    %v385 = vld [vmem:[#allocation4 + $0xa0] sm:$0xff]
    %v386 = vld [vmem:[#allocation4 + $0xa8] sm:$0xff]
    %v387 = vld [vmem:[#allocation4 + $0xb0] sm:$0xff]
    %v388 = vld [vmem:[#allocation4 + $0xb8] sm:$0xff]
    %v389 = vld [vmem:[#allocation4 + $0xc0] sm:$0xff]
    %v390 = vld [vmem:[#allocation4 + $0xc8] sm:$0xff]
    %v391 = vld [vmem:[#allocation4 + $0xd0] sm:$0xff]
    %v392 = vld [vmem:[#allocation4 + $0xd8] sm:$0xff]
    %v393 = vld [vmem:[#allocation4 + $0xe0] sm:$0xff]
    %v394 = vld [vmem:[#allocation4 + $0xe8] sm:$0xff]
    %v395 = vld [vmem:[#allocation4 + $0xf0] sm:$0xff]
    %v396 = vld [vmem:[#allocation4 + $0xf8] sm:$0xff]
    %v397 = vld [vmem:[#allocation4 + $0x100] sm:$0xff]
    %v398 = vld [vmem:[#allocation4 + $0x108] sm:$0xff]
    %v399 = vld [vmem:[#allocation4 + $0x110] sm:$0xff]
    %v400 = vld [vmem:[#allocation4 + $0x118] sm:$0xff]
    %v401 = vld [vmem:[#allocation4 + $0x120] sm:$0xff]
    %v402 = vld [vmem:[#allocation4 + $0x128] sm:$0xff]
    %v403 = vld [vmem:[#allocation4 + $0x130] sm:$0xff]
    %v404 = vld [vmem:[#allocation4 + $0x138] sm:$0xff]
    %v405 = vld [vmem:[#allocation4 + $0x140] sm:$0xff]
    %v406 = vld [vmem:[#allocation4 + $0x148] sm:$0xff]
    %v407 = vld [vmem:[#allocation4 + $0x150] sm:$0xff]
    %v408 = vld [vmem:[#allocation4 + $0x158] sm:$0xff]
    %v409 = vld [vmem:[#allocation4 + $0x160] sm:$0xff]
    %v410 = vld [vmem:[#allocation4 + $0x168] sm:$0xff]
    %v411 = vld [vmem:[#allocation4 + $0x170] sm:$0xff]
    %v412 = vld [vmem:[#allocation4 + $0x178] sm:$0xff]
    %v413 = vld [vmem:[#allocation4 + $0x180] sm:$0xff]
    %v414 = vld [vmem:[#allocation4 + $0x188] sm:$0xff]
    %v415 = vld [vmem:[#allocation4 + $0x190] sm:$0xff]
    %v416 = vld [vmem:[#allocation4 + $0x198] sm:$0xff]
    %v417 = vld [vmem:[#allocation4 + $0x1a0] sm:$0xff]
    %v418 = vld [vmem:[#allocation4 + $0x1a8] sm:$0xff]
    %v419 = vld [vmem:[#allocation4 + $0x1b0] sm:$0xff]
    %v420 = vld [vmem:[#allocation4 + $0x1b8] sm:$0xff]
    %v421 = vld [vmem:[#allocation4 + $0x1c0] sm:$0xff]
    %v422 = vld [vmem:[#allocation4 + $0x1c8] sm:$0xff]
    %v423 = vld [vmem:[#allocation4 + $0x1d0] sm:$0xff]
    %v424 = vld [vmem:[#allocation4 + $0x1d8] sm:$0xff]
    %v425 = vld [vmem:[#allocation4 + $0x1e0] sm:$0xff]
    %v426 = vld [vmem:[#allocation4 + $0x1e8] sm:$0xff]
    %v427 = vld [vmem:[#allocation4 + $0x1f0] sm:$0xff]
    %v428 = vld [vmem:[#allocation4 + $0x1f8] sm:$0xff]
    %429 = vmatprep.subr.mxu0 %v426
    %430 = vmatpush1.msra.mxu0 %v425
    %431 = vmatprep.subr.mxu0 %v422
    %432 = vmatpush1.msra.mxu0 %v421
    %433 = vmatprep.subr.mxu0 %v418
    %434 = vmatpush1.msra.mxu0 %v417
    %435 = vmatprep.subr.mxu0 %v414
    %436 = vmatpush1.msra.mxu0 %v413
    %437 = vmatprep.subr.mxu0 %v410
    %438 = vmatpush1.msra.mxu0 %v409
    %439 = vmatprep.subr.mxu0 %v406
    %440 = vmatpush1.msra.mxu0 %v405
    %441 = vmatprep.subr.mxu0 %v402
    %442 = vmatpush1.msra.mxu0 %v401
    %443 = vmatprep.subr.mxu0 %v398
    %444 = vmatpush1.msra.mxu0 %v397
    %445 = vmatprep.subr.mxu0 %v394
    %446 = vmatpush1.msra.mxu0 %v393
    %447 = vmatprep.subr.mxu0 %v390
    %448 = vmatpush1.msra.mxu0 %v389
    %449 = vmatprep.subr.mxu0 %v386
    %450 = vmatpush1.msra.mxu0 %v385
    %451 = vmatprep.subr.mxu0 %v382
    %452 = vmatpush1.msra.mxu0 %v381
    %453 = vmatprep.subr.mxu0 %v378
    %454 = vmatpush1.msra.mxu0 %v377
    %455 = vmatprep.subr.mxu0 %v374
    %456 = vmatpush1.msra.mxu0 %v373
    %457 = vmatprep.subr.mxu0 %v370
    %458 = vmatpush1.msra.mxu0 %v369
    %459 = vmatprep.subr.mxu0 %v366
    %460 = vmatpush1.msra.mxu0 %v365
    %461 = vmatprep.subr.mxu0 0.0
    %462 = vmatpush2.msra.mxu0 0.0
    %463 = vmatprep.subr.mxu0 0.0
    %464 = vmatpush2.msra.mxu0 0.0
    %465 = vmatprep.subr.mxu0 0.0
    %466 = vmatpush2.msra.mxu0 0.0
    %467 = vmatprep.subr.mxu0 0.0
    %468 = vmatpush2.msra.mxu0 0.0
    %469 = vmatprep.subr.mxu0 0.0
    %470 = vmatpush2.msra.mxu0 0.0
    %471 = vmatprep.subr.mxu0 0.0
    %472 = vmatpush2.msra.mxu0 0.0
    %473 = vmatprep.subr.mxu0 0.0
    %474 = vmatpush2.msra.mxu0 0.0
    %475 = vmatprep.subr.mxu0 0.0
    %476 = vmatpush2.msra.mxu0 0.0
    %477 = vmatprep.subr.mxu0 0.0
    %478 = vmatpush2.msra.mxu0 0.0
    %479 = vmatprep.subr.mxu0 0.0
    %480 = vmatpush2.msra.mxu0 0.0
    %481 = vmatprep.subr.mxu0 0.0
    %482 = vmatpush2.msra.mxu0 0.0
    %483 = vmatprep.subr.mxu0 0.0
    %484 = vmatpush2.msra.mxu0 0.0
    %485 = vmatprep.subr.mxu0 0.0
    %486 = vmatpush2.msra.mxu0 0.0
    %487 = vmatprep.subr.mxu0 0.0
    %488 = vmatpush2.msra.mxu0 0.0
    %489 = vmatprep.subr.mxu0 0.0
    %490 = vmatpush2.msra.mxu0 0.0
    %491 = vmatprep.subr.mxu0 0.0
    %492 = vmatpush2.msra.mxu0 0.0
    %493 = vmatprep.mubr.f32.mxu0 0.0
    %494 = vmatmul.mubr.f32.gmra.mxu0 0.0
    %v495 = vpop.f32.mrf.mxu0
    %v496 = vadd.f32 0.0, %v495
    %v497 = vpop.f32.mrf.mxu0
    %v498 = vadd.f32 0.0, %v497
    %499 = vdwg.mxu0
    %500 = vmatprep.subr.mxu0 %v428
    %501 = vmatpush1.msra.mxu0 %v427
    %502 = vmatprep.subr.mxu0 %v424
    %503 = vmatpush1.msra.mxu0 %v423
    %504 = vmatprep.subr.mxu0 %v420
    %505 = vmatpush1.msra.mxu0 %v419
    %506 = vmatprep.subr.mxu0 %v416
    %507 = vmatpush1.msra.mxu0 %v415
    %508 = vmatprep.subr.mxu0 %v412
    %509 = vmatpush1.msra.mxu0 %v411
    %510 = vmatprep.subr.mxu0 %v408
    %511 = vmatpush1.msra.mxu0 %v407
    %512 = vmatprep.subr.mxu0 %v404
    %513 = vmatpush1.msra.mxu0 %v403
    %514 = vmatprep.subr.mxu0 %v400
    %515 = vmatpush1.msra.mxu0 %v399
    %516 = vmatprep.subr.mxu0 %v396
    %517 = vmatpush1.msra.mxu0 %v395
    %518 = vmatprep.subr.mxu0 %v392
    %519 = vmatpush1.msra.mxu0 %v391
    %520 = vmatprep.subr.mxu0 %v388
    %521 = vmatpush1.msra.mxu0 %v387
    %522 = vmatprep.subr.mxu0 %v384
    %523 = vmatpush1.msra.mxu0 %v383
    %524 = vmatprep.subr.mxu0 %v380
    %525 = vmatpush1.msra.mxu0 %v379
    %526 = vmatprep.subr.mxu0 %v376
    %527 = vmatpush1.msra.mxu0 %v375
    %528 = vmatprep.subr.mxu0 %v372
    %529 = vmatpush1.msra.mxu0 %v371
    %530 = vmatprep.subr.mxu0 %v368
    %531 = vmatpush1.msra.mxu0 %v367
    %532 = vmatprep.subr.mxu0 0.0
    %533 = vmatpush2.msra.mxu0 0.0
    %534 = vmatprep.subr.mxu0 0.0
    %535 = vmatpush2.msra.mxu0 0.0
    %536 = vmatprep.subr.mxu0 0.0
    %537 = vmatpush2.msra.mxu0 0.0
    %538 = vmatprep.subr.mxu0 0.0
    %539 = vmatpush2.msra.mxu0 0.0
    %540 = vmatprep.subr.mxu0 0.0
    %541 = vmatpush2.msra.mxu0 0.0
    %542 = vmatprep.subr.mxu0 0.0
    %543 = vmatpush2.msra.mxu0 0.0
    %544 = vmatprep.subr.mxu0 0.0
    %545 = vmatpush2.msra.mxu0 0.0
    %546 = vmatprep.subr.mxu0 0.0
    %547 = vmatpush2.msra.mxu0 0.0
    %548 = vmatprep.subr.mxu0 0.0
    %549 = vmatpush2.msra.mxu0 0.0
    %550 = vmatprep.subr.mxu0 0.0
    %551 = vmatpush2.msra.mxu0 0.0
    %552 = vmatprep.subr.mxu0 0.0
    %553 = vmatpush2.msra.mxu0 0.0
    %554 = vmatprep.subr.mxu0 0.0
    %555 = vmatpush2.msra.mxu0 0.0
    %556 = vmatprep.subr.mxu0 0.0
    %557 = vmatpush2.msra.mxu0 0.0
    %558 = vmatprep.subr.mxu0 0.0
    %559 = vmatpush2.msra.mxu0 0.0
    %560 = vmatprep.subr.mxu0 0.0
    %561 = vmatpush2.msra.mxu0 0.0
    %562 = vmatprep.subr.mxu0 0.0
    %563 = vmatpush2.msra.mxu0 0.0
    %564 = vmatprep.mubr.f32.mxu0 0.0
    %565 = vmatmul.mubr.f32.gmra.mxu0 0.0
    %v566 = vpop.f32.mrf.mxu0
    %v567 = vadd.f32 0.0, %v566
    %v568 = vpop.f32.mrf.mxu0
    %v569 = vadd.f32 0.0, %v568
    %570 = vdwg.mxu0
    %v571 = vadd.f32 %v361, %v496
    %v572 = vadd.f32 %v362, %v498
    %v573 = vadd.f32 %v363, %v567
    %v574 = vadd.f32 %v364, %v569
    %v575 = vmul.f32 %v571, 0.5
    %v576 = vtanh.pop %v575
    %v577 = vmul.f32 %v576, 0.5
    %v578 = vadd.f32 %v577, 0.5
    %v579 = vmul.f32 %v572, 0.5
    %v580 = vtanh.pop %v579
    %v581 = vmul.f32 %v580, 0.5
    %v582 = vadd.f32 %v581, 0.5
    %v583 = vtanh.pop %v573
    %v584 = vmul.f32 %v574, 0.5
    %v585 = vtanh.pop %v584
    %v586 = vmul.f32 %v585, 0.5
    %v587 = vadd.f32 %v586, 0.5
    %v588 = vmul.f32 %v582, 0.0
    %v589 = vmul.f32 %v578, %v583
    %v590 = vadd.f32 %v588, %v589
    %v591 = vtanh.pop %v590
    %v592 = vmul.f32 %v587, %v591
    %s593 = scalar_lea.vmem [#allocation2], 32
    %v594 = vld [vmem:[%s593] sm:$0xff]
    %v595 = vld [vmem:[%s593 + $0x8] sm:$0xff]
    %v596 = vld [vmem:[%s593 + $0x10] sm:$0xff]
    %v597 = vld [vmem:[%s593 + $0x18] sm:$0xff]
    %598 = vmatprep.subr.mxu0 %v426
    %599 = vmatpush1.msra.mxu0 %v425
    %600 = vmatprep.subr.mxu0 %v422
    %601 = vmatpush1.msra.mxu0 %v421
    %602 = vmatprep.subr.mxu0 %v418
    %603 = vmatpush1.msra.mxu0 %v417
    %604 = vmatprep.subr.mxu0 %v414
    %605 = vmatpush1.msra.mxu0 %v413
    %606 = vmatprep.subr.mxu0 %v410
    %607 = vmatpush1.msra.mxu0 %v409
    %608 = vmatprep.subr.mxu0 %v406
    %609 = vmatpush1.msra.mxu0 %v405
    %610 = vmatprep.subr.mxu0 %v402
    %611 = vmatpush1.msra.mxu0 %v401
    %612 = vmatprep.subr.mxu0 %v398
    %613 = vmatpush1.msra.mxu0 %v397
    %614 = vmatprep.subr.mxu0 %v394
    %615 = vmatpush1.msra.mxu0 %v393
    %616 = vmatprep.subr.mxu0 %v390
    %617 = vmatpush1.msra.mxu0 %v389
    %618 = vmatprep.subr.mxu0 %v386
    %619 = vmatpush1.msra.mxu0 %v385
    %620 = vmatprep.subr.mxu0 %v382
    %621 = vmatpush1.msra.mxu0 %v381
    %622 = vmatprep.subr.mxu0 %v378
    %623 = vmatpush1.msra.mxu0 %v377
    %624 = vmatprep.subr.mxu0 %v374
    %625 = vmatpush1.msra.mxu0 %v373
    %626 = vmatprep.subr.mxu0 %v370
    %627 = vmatpush1.msra.mxu0 %v369
    %628 = vmatprep.subr.mxu0 %v366
    %629 = vmatpush1.msra.mxu0 %v365
    %630 = vmatprep.subr.mxu0 0.0
    %631 = vmatpush2.msra.mxu0 0.0
    %632 = vmatprep.subr.mxu0 0.0
    %633 = vmatpush2.msra.mxu0 0.0
    %634 = vmatprep.subr.mxu0 0.0
    %635 = vmatpush2.msra.mxu0 0.0
    %636 = vmatprep.subr.mxu0 0.0
    %637 = vmatpush2.msra.mxu0 0.0
    %638 = vmatprep.subr.mxu0 0.0
    %639 = vmatpush2.msra.mxu0 0.0
    %640 = vmatprep.subr.mxu0 0.0
    %641 = vmatpush2.msra.mxu0 0.0
    %642 = vmatprep.subr.mxu0 0.0
    %643 = vmatpush2.msra.mxu0 0.0
    %644 = vmatprep.subr.mxu0 0.0
    %645 = vmatpush2.msra.mxu0 0.0
    %646 = vmatprep.subr.mxu0 0.0
    %647 = vmatpush2.msra.mxu0 0.0
    %648 = vmatprep.subr.mxu0 0.0
    %649 = vmatpush2.msra.mxu0 0.0
    %650 = vmatprep.subr.mxu0 0.0
    %651 = vmatpush2.msra.mxu0 0.0
    %652 = vmatprep.subr.mxu0 0.0
    %653 = vmatpush2.msra.mxu0 0.0
    %654 = vmatprep.subr.mxu0 0.0
    %655 = vmatpush2.msra.mxu0 0.0
    %656 = vmatprep.subr.mxu0 0.0
    %657 = vmatpush2.msra.mxu0 0.0
    %658 = vmatprep.subr.mxu0 0.0
    %659 = vmatpush2.msra.mxu0 0.0
    %660 = vmatprep.subr.mxu0 0.0
    %661 = vmatpush2.msra.mxu0 0.0
    %662 = vmatprep.mubr.f32.mxu0 0.0
    %663 = vmatmul.mubr.f32.gmra.mxu0 %v592
    %v664 = vpop.f32.mrf.mxu0
    %v665 = vadd.f32 0.0, %v664
    %v666 = vpop.f32.mrf.mxu0
    %v667 = vadd.f32 0.0, %v666
    %668 = vdwg.mxu0
    %669 = vmatprep.subr.mxu0 %v428
    %670 = vmatpush1.msra.mxu0 %v427
    %671 = vmatprep.subr.mxu0 %v424
    %672 = vmatpush1.msra.mxu0 %v423
    %673 = vmatprep.subr.mxu0 %v420
    %674 = vmatpush1.msra.mxu0 %v419
    %675 = vmatprep.subr.mxu0 %v416
    %676 = vmatpush1.msra.mxu0 %v415
    %677 = vmatprep.subr.mxu0 %v412
    %678 = vmatpush1.msra.mxu0 %v411
    %679 = vmatprep.subr.mxu0 %v408
    %680 = vmatpush1.msra.mxu0 %v407
    %681 = vmatprep.subr.mxu0 %v404
    %682 = vmatpush1.msra.mxu0 %v403
    %683 = vmatprep.subr.mxu0 %v400
    %684 = vmatpush1.msra.mxu0 %v399
    %685 = vmatprep.subr.mxu0 %v396
    %686 = vmatpush1.msra.mxu0 %v395
    %687 = vmatprep.subr.mxu0 %v392
    %688 = vmatpush1.msra.mxu0 %v391
    %689 = vmatprep.subr.mxu0 %v388
    %690 = vmatpush1.msra.mxu0 %v387
    %691 = vmatprep.subr.mxu0 %v384
    %692 = vmatpush1.msra.mxu0 %v383
    %693 = vmatprep.subr.mxu0 %v380
    %694 = vmatpush1.msra.mxu0 %v379
    %695 = vmatprep.subr.mxu0 %v376
    %696 = vmatpush1.msra.mxu0 %v375
    %697 = vmatprep.subr.mxu0 %v372
    %698 = vmatpush1.msra.mxu0 %v371
    %699 = vmatprep.subr.mxu0 %v368
    %700 = vmatpush1.msra.mxu0 %v367
    %701 = vmatprep.subr.mxu0 0.0
    %702 = vmatpush2.msra.mxu0 0.0
    %703 = vmatprep.subr.mxu0 0.0
    %704 = vmatpush2.msra.mxu0 0.0
    %705 = vmatprep.subr.mxu0 0.0
    %706 = vmatpush2.msra.mxu0 0.0
    %707 = vmatprep.subr.mxu0 0.0
    %708 = vmatpush2.msra.mxu0 0.0
    %709 = vmatprep.subr.mxu0 0.0
    %710 = vmatpush2.msra.mxu0 0.0
    %711 = vmatprep.subr.mxu0 0.0
    %712 = vmatpush2.msra.mxu0 0.0
    %713 = vmatprep.subr.mxu0 0.0
    %714 = vmatpush2.msra.mxu0 0.0
    %715 = vmatprep.subr.mxu0 0.0
    %716 = vmatpush2.msra.mxu0 0.0
    %717 = vmatprep.subr.mxu0 0.0
    %718 = vmatpush2.msra.mxu0 0.0
    %719 = vmatprep.subr.mxu0 0.0
    %720 = vmatpush2.msra.mxu0 0.0
    %721 = vmatprep.subr.mxu0 0.0
    %722 = vmatpush2.msra.mxu0 0.0
    %723 = vmatprep.subr.mxu0 0.0
    %724 = vmatpush2.msra.mxu0 0.0
    %725 = vmatprep.subr.mxu0 0.0
    %726 = vmatpush2.msra.mxu0 0.0
    %727 = vmatprep.subr.mxu0 0.0
    %728 = vmatpush2.msra.mxu0 0.0
    %729 = vmatprep.subr.mxu0 0.0
    %730 = vmatpush2.msra.mxu0 0.0
    %731 = vmatprep.subr.mxu0 0.0
    %732 = vmatpush2.msra.mxu0 0.0
    %733 = vmatprep.mubr.f32.mxu0 0.0
    %734 = vmatmul.mubr.f32.gmra.mxu0 %v592
    %v735 = vpop.f32.mrf.mxu0
    %v736 = vadd.f32 0.0, %v735
    %v737 = vpop.f32.mrf.mxu0
    %v738 = vadd.f32 0.0, %v737
    %739 = vdwg.mxu0
    %v740 = vadd.f32 %v594, %v665
    %v741 = vadd.f32 %v595, %v667
    %v742 = vadd.f32 %v596, %v736
    %v743 = vadd.f32 %v597, %v738
    %v744 = vmul.f32 %v740, 0.5
    %v745 = vtanh.pop %v744
    %v746 = vmul.f32 %v745, 0.5
    %v747 = vadd.f32 %v746, 0.5
    %v748 = vmul.f32 %v741, 0.5
    %v749 = vtanh.pop %v748
    %v750 = vmul.f32 %v749, 0.5
    %v751 = vadd.f32 %v750, 0.5
    %v752 = vtanh.pop %v742
    %v753 = vmul.f32 %v743, 0.5
    %v754 = vtanh.pop %v753
    %v755 = vmul.f32 %v754, 0.5
    %v756 = vadd.f32 %v755, 0.5
    %v757 = vmul.f32 %v751, %v590
    %v758 = vmul.f32 %v747, %v752
    %v759 = vadd.f32 %v757, %v758
    %v760 = vtanh.pop %v759
    %v761 = vmul.f32 %v756, %v760
    %s762 = scalar_lea.vmem [#allocation2], 64
    %v763 = vld [vmem:[%s762] sm:$0xff]
    %v764 = vld [vmem:[%s762 + $0x8] sm:$0xff]
    %v765 = vld [vmem:[%s762 + $0x10] sm:$0xff]
    %v766 = vld [vmem:[%s762 + $0x18] sm:$0xff]
    %767 = vmatprep.subr.mxu0 %v426
    %768 = vmatpush1.msra.mxu0 %v425
    %769 = vmatprep.subr.mxu0 %v422
    %770 = vmatpush1.msra.mxu0 %v421
    %771 = vmatprep.subr.mxu0 %v418
    %772 = vmatpush1.msra.mxu0 %v417
    %773 = vmatprep.subr.mxu0 %v414
    %774 = vmatpush1.msra.mxu0 %v413
    %775 = vmatprep.subr.mxu0 %v410
    %776 = vmatpush1.msra.mxu0 %v409
    %777 = vmatprep.subr.mxu0 %v406
    %778 = vmatpush1.msra.mxu0 %v405
    %779 = vmatprep.subr.mxu0 %v402
    %780 = vmatpush1.msra.mxu0 %v401
    %781 = vmatprep.subr.mxu0 %v398
    %782 = vmatpush1.msra.mxu0 %v397
    %783 = vmatprep.subr.mxu0 %v394
    %784 = vmatpush1.msra.mxu0 %v393
    %785 = vmatprep.subr.mxu0 %v390
    %786 = vmatpush1.msra.mxu0 %v389
    %787 = vmatprep.subr.mxu0 %v386
    %788 = vmatpush1.msra.mxu0 %v385
    %789 = vmatprep.subr.mxu0 %v382
    %790 = vmatpush1.msra.mxu0 %v381
    %791 = vmatprep.subr.mxu0 %v378
    %792 = vmatpush1.msra.mxu0 %v377
    %793 = vmatprep.subr.mxu0 %v374
    %794 = vmatpush1.msra.mxu0 %v373
    %795 = vmatprep.subr.mxu0 %v370
    %796 = vmatpush1.msra.mxu0 %v369
    %797 = vmatprep.subr.mxu0 %v366
    %798 = vmatpush1.msra.mxu0 %v365
    %799 = vmatprep.subr.mxu0 0.0
    %800 = vmatpush2.msra.mxu0 0.0
    %801 = vmatprep.subr.mxu0 0.0
    %802 = vmatpush2.msra.mxu0 0.0
    %803 = vmatprep.subr.mxu0 0.0
    %804 = vmatpush2.msra.mxu0 0.0
    %805 = vmatprep.subr.mxu0 0.0
    %806 = vmatpush2.msra.mxu0 0.0
    %807 = vmatprep.subr.mxu0 0.0
    %808 = vmatpush2.msra.mxu0 0.0
    %809 = vmatprep.subr.mxu0 0.0
    %810 = vmatpush2.msra.mxu0 0.0
    %811 = vmatprep.subr.mxu0 0.0
    %812 = vmatpush2.msra.mxu0 0.0
    %813 = vmatprep.subr.mxu0 0.0
    %814 = vmatpush2.msra.mxu0 0.0
    %815 = vmatprep.subr.mxu0 0.0
    %816 = vmatpush2.msra.mxu0 0.0
    %817 = vmatprep.subr.mxu0 0.0
    %818 = vmatpush2.msra.mxu0 0.0
    %819 = vmatprep.subr.mxu0 0.0
    %820 = vmatpush2.msra.mxu0 0.0
    %821 = vmatprep.subr.mxu0 0.0
    %822 = vmatpush2.msra.mxu0 0.0
    %823 = vmatprep.subr.mxu0 0.0
    %824 = vmatpush2.msra.mxu0 0.0
    %825 = vmatprep.subr.mxu0 0.0
    %826 = vmatpush2.msra.mxu0 0.0
    %827 = vmatprep.subr.mxu0 0.0
    %828 = vmatpush2.msra.mxu0 0.0
    %829 = vmatprep.subr.mxu0 0.0
    %830 = vmatpush2.msra.mxu0 0.0
    %831 = vmatprep.mubr.f32.mxu0 0.0
    %832 = vmatmul.mubr.f32.gmra.mxu0 %v761
    %v833 = vpop.f32.mrf.mxu0
    %v834 = vadd.f32 0.0, %v833
    %v835 = vpop.f32.mrf.mxu0
    %v836 = vadd.f32 0.0, %v835
    %837 = vdwg.mxu0
    %838 = vmatprep.subr.mxu0 %v428
    %839 = vmatpush1.msra.mxu0 %v427
    %840 = vmatprep.subr.mxu0 %v424
    %841 = vmatpush1.msra.mxu0 %v423
    %842 = vmatprep.subr.mxu0 %v420
    %843 = vmatpush1.msra.mxu0 %v419
    %844 = vmatprep.subr.mxu0 %v416
    %845 = vmatpush1.msra.mxu0 %v415
    %846 = vmatprep.subr.mxu0 %v412
    %847 = vmatpush1.msra.mxu0 %v411
    %848 = vmatprep.subr.mxu0 %v408
    %849 = vmatpush1.msra.mxu0 %v407
    %850 = vmatprep.subr.mxu0 %v404
    %851 = vmatpush1.msra.mxu0 %v403
    %852 = vmatprep.subr.mxu0 %v400
    %853 = vmatpush1.msra.mxu0 %v399
    %854 = vmatprep.subr.mxu0 %v396
    %855 = vmatpush1.msra.mxu0 %v395
    %856 = vmatprep.subr.mxu0 %v392
    %857 = vmatpush1.msra.mxu0 %v391
    %858 = vmatprep.subr.mxu0 %v388
    %859 = vmatpush1.msra.mxu0 %v387
    %860 = vmatprep.subr.mxu0 %v384
    %861 = vmatpush1.msra.mxu0 %v383
    %862 = vmatprep.subr.mxu0 %v380
    %863 = vmatpush1.msra.mxu0 %v379
    %864 = vmatprep.subr.mxu0 %v376
    %865 = vmatpush1.msra.mxu0 %v375
    %866 = vmatprep.subr.mxu0 %v372
    %867 = vmatpush1.msra.mxu0 %v371
    %868 = vmatprep.subr.mxu0 %v368
    %869 = vmatpush1.msra.mxu0 %v367
    %870 = vmatprep.subr.mxu0 0.0
    %871 = vmatpush2.msra.mxu0 0.0
    %872 = vmatprep.subr.mxu0 0.0
    %873 = vmatpush2.msra.mxu0 0.0
    %874 = vmatprep.subr.mxu0 0.0
    %875 = vmatpush2.msra.mxu0 0.0
    %876 = vmatprep.subr.mxu0 0.0
    %877 = vmatpush2.msra.mxu0 0.0
    %878 = vmatprep.subr.mxu0 0.0
    %879 = vmatpush2.msra.mxu0 0.0
    %880 = vmatprep.subr.mxu0 0.0
    %881 = vmatpush2.msra.mxu0 0.0
    %882 = vmatprep.subr.mxu0 0.0
    %883 = vmatpush2.msra.mxu0 0.0
    %884 = vmatprep.subr.mxu0 0.0
    %885 = vmatpush2.msra.mxu0 0.0
    %886 = vmatprep.subr.mxu0 0.0
    %887 = vmatpush2.msra.mxu0 0.0
    %888 = vmatprep.subr.mxu0 0.0
    %889 = vmatpush2.msra.mxu0 0.0
    %890 = vmatprep.subr.mxu0 0.0
    %891 = vmatpush2.msra.mxu0 0.0
    %892 = vmatprep.subr.mxu0 0.0
    %893 = vmatpush2.msra.mxu0 0.0
    %894 = vmatprep.subr.mxu0 0.0
    %895 = vmatpush2.msra.mxu0 0.0
    %896 = vmatprep.subr.mxu0 0.0
    %897 = vmatpush2.msra.mxu0 0.0
    %898 = vmatprep.subr.mxu0 0.0
    %899 = vmatpush2.msra.mxu0 0.0
    %900 = vmatprep.subr.mxu0 0.0
    %901 = vmatpush2.msra.mxu0 0.0
    %902 = vmatprep.mubr.f32.mxu0 0.0
    %903 = vmatmul.mubr.f32.gmra.mxu0 %v761
    %v904 = vpop.f32.mrf.mxu0
    %v905 = vadd.f32 0.0, %v904
    %v906 = vpop.f32.mrf.mxu0
    %v907 = vadd.f32 0.0, %v906
    %908 = vdwg.mxu0
    %v909 = vadd.f32 %v763, %v834
    %v910 = vadd.f32 %v764, %v836
    %v911 = vadd.f32 %v765, %v905
    %v912 = vadd.f32 %v766, %v907
    %v913 = vmul.f32 %v909, 0.5
    %v914 = vtanh.pop %v913
    %v915 = vmul.f32 %v914, 0.5
    %v916 = vadd.f32 %v915, 0.5
    %v917 = vmul.f32 %v910, 0.5
    %v918 = vtanh.pop %v917
    %v919 = vmul.f32 %v918, 0.5
    %v920 = vadd.f32 %v919, 0.5
    %v921 = vtanh.pop %v911
    %v922 = vmul.f32 %v912, 0.5
    %v923 = vtanh.pop %v922
    %v924 = vmul.f32 %v923, 0.5
    %v925 = vadd.f32 %v924, 0.5
    %v926 = vmul.f32 %v920, %v759
    %v927 = vmul.f32 %v916, %v921
    %v928 = vadd.f32 %v926, %v927
    %v929 = vtanh.pop %v928
    %v930 = vmul.f32 %v925, %v929
    %s931 = scalar_lea.vmem [#allocation2], 96
    %v932 = vld [vmem:[%s931] sm:$0xff]
    %v933 = vld [vmem:[%s931 + $0x8] sm:$0xff]
    %v934 = vld [vmem:[%s931 + $0x10] sm:$0xff]
    %v935 = vld [vmem:[%s931 + $0x18] sm:$0xff]
    %936 = vmatprep.subr.mxu0 %v426
    %937 = vmatpush1.msra.mxu0 %v425
    %938 = vmatprep.subr.mxu0 %v422
    %939 = vmatpush1.msra.mxu0 %v421
    %940 = vmatprep.subr.mxu0 %v418
    %941 = vmatpush1.msra.mxu0 %v417
    %942 = vmatprep.subr.mxu0 %v414
    %943 = vmatpush1.msra.mxu0 %v413
    %944 = vmatprep.subr.mxu0 %v410
    %945 = vmatpush1.msra.mxu0 %v409
    %946 = vmatprep.subr.mxu0 %v406
    %947 = vmatpush1.msra.mxu0 %v405
    %948 = vmatprep.subr.mxu0 %v402
    %949 = vmatpush1.msra.mxu0 %v401
    %950 = vmatprep.subr.mxu0 %v398
    %951 = vmatpush1.msra.mxu0 %v397
    %952 = vmatprep.subr.mxu0 %v394
    %953 = vmatpush1.msra.mxu0 %v393
    %954 = vmatprep.subr.mxu0 %v390
    %955 = vmatpush1.msra.mxu0 %v389
    %956 = vmatprep.subr.mxu0 %v386
    %957 = vmatpush1.msra.mxu0 %v385
    %958 = vmatprep.subr.mxu0 %v382
    %959 = vmatpush1.msra.mxu0 %v381
    %960 = vmatprep.subr.mxu0 %v378
    %961 = vmatpush1.msra.mxu0 %v377
    %962 = vmatprep.subr.mxu0 %v374
    %963 = vmatpush1.msra.mxu0 %v373
    %964 = vmatprep.subr.mxu0 %v370
    %965 = vmatpush1.msra.mxu0 %v369
    %966 = vmatprep.subr.mxu0 %v366
    %967 = vmatpush1.msra.mxu0 %v365
    %968 = vmatprep.subr.mxu0 0.0
    %969 = vmatpush2.msra.mxu0 0.0
    %970 = vmatprep.subr.mxu0 0.0
    %971 = vmatpush2.msra.mxu0 0.0
    %972 = vmatprep.subr.mxu0 0.0
    %973 = vmatpush2.msra.mxu0 0.0
    %974 = vmatprep.subr.mxu0 0.0
    %975 = vmatpush2.msra.mxu0 0.0
    %976 = vmatprep.subr.mxu0 0.0
    %977 = vmatpush2.msra.mxu0 0.0
    %978 = vmatprep.subr.mxu0 0.0
    %979 = vmatpush2.msra.mxu0 0.0
    %980 = vmatprep.subr.mxu0 0.0
    %981 = vmatpush2.msra.mxu0 0.0
    %982 = vmatprep.subr.mxu0 0.0
    %983 = vmatpush2.msra.mxu0 0.0
    %984 = vmatprep.subr.mxu0 0.0
    %985 = vmatpush2.msra.mxu0 0.0
    %986 = vmatprep.subr.mxu0 0.0
    %987 = vmatpush2.msra.mxu0 0.0
    %988 = vmatprep.subr.mxu0 0.0
    %989 = vmatpush2.msra.mxu0 0.0
    %990 = vmatprep.subr.mxu0 0.0
    %991 = vmatpush2.msra.mxu0 0.0
    %992 = vmatprep.subr.mxu0 0.0
    %993 = vmatpush2.msra.mxu0 0.0
    %994 = vmatprep.subr.mxu0 0.0
    %995 = vmatpush2.msra.mxu0 0.0
    %996 = vmatprep.subr.mxu0 0.0
    %997 = vmatpush2.msra.mxu0 0.0
    %998 = vmatprep.subr.mxu0 0.0
    %999 = vmatpush2.msra.mxu0 0.0
    %1000 = vmatprep.mubr.f32.mxu0 0.0
    %1001 = vmatmul.mubr.f32.gmra.mxu0 %v930
    %v1002 = vpop.f32.mrf.mxu0
    %v1003 = vadd.f32 0.0, %v1002
    %v1004 = vpop.f32.mrf.mxu0
    %v1005 = vadd.f32 0.0, %v1004
    %1006 = vdwg.mxu0
    %1007 = vmatprep.subr.mxu0 %v428
    %1008 = vmatpush1.msra.mxu0 %v427
    %1009 = vmatprep.subr.mxu0 %v424
    %1010 = vmatpush1.msra.mxu0 %v423
    %1011 = vmatprep.subr.mxu0 %v420
    %1012 = vmatpush1.msra.mxu0 %v419
    %1013 = vmatprep.subr.mxu0 %v416
    %1014 = vmatpush1.msra.mxu0 %v415
    %1015 = vmatprep.subr.mxu0 %v412
    %1016 = vmatpush1.msra.mxu0 %v411
    %1017 = vmatprep.subr.mxu0 %v408
    %1018 = vmatpush1.msra.mxu0 %v407
    %1019 = vmatprep.subr.mxu0 %v404
    %1020 = vmatpush1.msra.mxu0 %v403
    %1021 = vmatprep.subr.mxu0 %v400
    %1022 = vmatpush1.msra.mxu0 %v399
    %1023 = vmatprep.subr.mxu0 %v396
    %1024 = vmatpush1.msra.mxu0 %v395
    %1025 = vmatprep.subr.mxu0 %v392
    %1026 = vmatpush1.msra.mxu0 %v391
    %1027 = vmatprep.subr.mxu0 %v388
    %1028 = vmatpush1.msra.mxu0 %v387
    %1029 = vmatprep.subr.mxu0 %v384
    %1030 = vmatpush1.msra.mxu0 %v383
    %1031 = vmatprep.subr.mxu0 %v380
    %1032 = vmatpush1.msra.mxu0 %v379
    %1033 = vmatprep.subr.mxu0 %v376
    %1034 = vmatpush1.msra.mxu0 %v375
    %1035 = vmatprep.subr.mxu0 %v372
    %1036 = vmatpush1.msra.mxu0 %v371
    %1037 = vmatprep.subr.mxu0 %v368
    %1038 = vmatpush1.msra.mxu0 %v367
    %1039 = vmatprep.subr.mxu0 0.0
    %1040 = vmatpush2.msra.mxu0 0.0
    %1041 = vmatprep.subr.mxu0 0.0
    %1042 = vmatpush2.msra.mxu0 0.0
    %1043 = vmatprep.subr.mxu0 0.0
    %1044 = vmatpush2.msra.mxu0 0.0
    %1045 = vmatprep.subr.mxu0 0.0
    %1046 = vmatpush2.msra.mxu0 0.0
    %1047 = vmatprep.subr.mxu0 0.0
    %1048 = vmatpush2.msra.mxu0 0.0
    %1049 = vmatprep.subr.mxu0 0.0
    %1050 = vmatpush2.msra.mxu0 0.0
    %1051 = vmatprep.subr.mxu0 0.0
    %1052 = vmatpush2.msra.mxu0 0.0
    %1053 = vmatprep.subr.mxu0 0.0
    %1054 = vmatpush2.msra.mxu0 0.0
    %1055 = vmatprep.subr.mxu0 0.0
    %1056 = vmatpush2.msra.mxu0 0.0
    %1057 = vmatprep.subr.mxu0 0.0
    %1058 = vmatpush2.msra.mxu0 0.0
    %1059 = vmatprep.subr.mxu0 0.0
    %1060 = vmatpush2.msra.mxu0 0.0
    %1061 = vmatprep.subr.mxu0 0.0
    %1062 = vmatpush2.msra.mxu0 0.0
    %1063 = vmatprep.subr.mxu0 0.0
    %1064 = vmatpush2.msra.mxu0 0.0
    %1065 = vmatprep.subr.mxu0 0.0
    %1066 = vmatpush2.msra.mxu0 0.0
    %1067 = vmatprep.subr.mxu0 0.0
    %1068 = vmatpush2.msra.mxu0 0.0
    %1069 = vmatprep.subr.mxu0 0.0
    %1070 = vmatpush2.msra.mxu0 0.0
    %1071 = vmatprep.mubr.f32.mxu0 0.0
    %1072 = vmatmul.mubr.f32.gmra.mxu0 %v930
    %v1073 = vpop.f32.mrf.mxu0
    %v1074 = vadd.f32 0.0, %v1073
    %v1075 = vpop.f32.mrf.mxu0
    %v1076 = vadd.f32 0.0, %v1075
    %1077 = vdwg.mxu0
    %v1078 = vadd.f32 %v932, %v1003
    %v1079 = vadd.f32 %v933, %v1005
    %v1080 = vadd.f32 %v934, %v1074
    %v1081 = vadd.f32 %v935, %v1076
    %v1082 = vmul.f32 %v1078, 0.5
    %v1083 = vtanh.pop %v1082
    %v1084 = vmul.f32 %v1083, 0.5
    %v1085 = vadd.f32 %v1084, 0.5
    %v1086 = vmul.f32 %v1079, 0.5
    %v1087 = vtanh.pop %v1086
    %v1088 = vmul.f32 %v1087, 0.5
    %v1089 = vadd.f32 %v1088, 0.5
    %v1090 = vtanh.pop %v1080
    %v1091 = vmul.f32 %v1081, 0.5
    %v1092 = vtanh.pop %v1091
    %v1093 = vmul.f32 %v1092, 0.5
    %v1094 = vadd.f32 %v1093, 0.5
    %v1095 = vmul.f32 %v1089, %v928
    %v1096 = vmul.f32 %v1085, %v1090
    %v1097 = vadd.f32 %v1095, %v1096
    %v1098 = vtanh.pop %v1097
    %v1099 = vmul.f32 %v1094, %v1098
    %s1100 = scalar_lea.vmem [#allocation2], 128
    %v1101 = vld [vmem:[%s1100] sm:$0xff]
    %v1102 = vld [vmem:[%s1100 + $0x8] sm:$0xff]
    %v1103 = vld [vmem:[%s1100 + $0x10] sm:$0xff]
    %v1104 = vld [vmem:[%s1100 + $0x18] sm:$0xff]
    %1105 = vmatprep.subr.mxu0 %v426
    %1106 = vmatpush1.msra.mxu0 %v425
    %1107 = vmatprep.subr.mxu0 %v422
    %1108 = vmatpush1.msra.mxu0 %v421
    %1109 = vmatprep.subr.mxu0 %v418
    %1110 = vmatpush1.msra.mxu0 %v417
    %1111 = vmatprep.subr.mxu0 %v414
    %1112 = vmatpush1.msra.mxu0 %v413
    %1113 = vmatprep.subr.mxu0 %v410
    %1114 = vmatpush1.msra.mxu0 %v409
    %1115 = vmatprep.subr.mxu0 %v406
    %1116 = vmatpush1.msra.mxu0 %v405
    %1117 = vmatprep.subr.mxu0 %v402
    %1118 = vmatpush1.msra.mxu0 %v401
    %1119 = vmatprep.subr.mxu0 %v398
    %1120 = vmatpush1.msra.mxu0 %v397
    %1121 = vmatprep.subr.mxu0 %v394
    %1122 = vmatpush1.msra.mxu0 %v393
    %1123 = vmatprep.subr.mxu0 %v390
    %1124 = vmatpush1.msra.mxu0 %v389
    %1125 = vmatprep.subr.mxu0 %v386
    %1126 = vmatpush1.msra.mxu0 %v385
    %1127 = vmatprep.subr.mxu0 %v382
    %1128 = vmatpush1.msra.mxu0 %v381
    %1129 = vmatprep.subr.mxu0 %v378
    %1130 = vmatpush1.msra.mxu0 %v377
    %1131 = vmatprep.subr.mxu0 %v374
    %1132 = vmatpush1.msra.mxu0 %v373
    %1133 = vmatprep.subr.mxu0 %v370
    %1134 = vmatpush1.msra.mxu0 %v369
    %1135 = vmatprep.subr.mxu0 %v366
    %1136 = vmatpush1.msra.mxu0 %v365
    %1137 = vmatprep.subr.mxu0 0.0
    %1138 = vmatpush2.msra.mxu0 0.0
    %1139 = vmatprep.subr.mxu0 0.0
    %1140 = vmatpush2.msra.mxu0 0.0
    %1141 = vmatprep.subr.mxu0 0.0
    %1142 = vmatpush2.msra.mxu0 0.0
    %1143 = vmatprep.subr.mxu0 0.0
    %1144 = vmatpush2.msra.mxu0 0.0
    %1145 = vmatprep.subr.mxu0 0.0
    %1146 = vmatpush2.msra.mxu0 0.0
    %1147 = vmatprep.subr.mxu0 0.0
    %1148 = vmatpush2.msra.mxu0 0.0
    %1149 = vmatprep.subr.mxu0 0.0
    %1150 = vmatpush2.msra.mxu0 0.0
    %1151 = vmatprep.subr.mxu0 0.0
    %1152 = vmatpush2.msra.mxu0 0.0
    %1153 = vmatprep.subr.mxu0 0.0
    %1154 = vmatpush2.msra.mxu0 0.0
    %1155 = vmatprep.subr.mxu0 0.0
    %1156 = vmatpush2.msra.mxu0 0.0
    %1157 = vmatprep.subr.mxu0 0.0
    %1158 = vmatpush2.msra.mxu0 0.0
    %1159 = vmatprep.subr.mxu0 0.0
    %1160 = vmatpush2.msra.mxu0 0.0
    %1161 = vmatprep.subr.mxu0 0.0
    %1162 = vmatpush2.msra.mxu0 0.0
    %1163 = vmatprep.subr.mxu0 0.0
    %1164 = vmatpush2.msra.mxu0 0.0
    %1165 = vmatprep.subr.mxu0 0.0
    %1166 = vmatpush2.msra.mxu0 0.0
    %1167 = vmatprep.subr.mxu0 0.0
    %1168 = vmatpush2.msra.mxu0 0.0
    %1169 = vmatprep.mubr.f32.mxu0 0.0
    %1170 = vmatmul.mubr.f32.gmra.mxu0 %v1099
    %v1171 = vpop.f32.mrf.mxu0
    %v1172 = vadd.f32 0.0, %v1171
    %v1173 = vpop.f32.mrf.mxu0
    %v1174 = vadd.f32 0.0, %v1173
    %1175 = vdwg.mxu0
    %1176 = vmatprep.subr.mxu0 %v428
    %1177 = vmatpush1.msra.mxu0 %v427
    %1178 = vmatprep.subr.mxu0 %v424
    %1179 = vmatpush1.msra.mxu0 %v423
    %1180 = vmatprep.subr.mxu0 %v420
    %1181 = vmatpush1.msra.mxu0 %v419
    %1182 = vmatprep.subr.mxu0 %v416
    %1183 = vmatpush1.msra.mxu0 %v415
    %1184 = vmatprep.subr.mxu0 %v412
    %1185 = vmatpush1.msra.mxu0 %v411
    %1186 = vmatprep.subr.mxu0 %v408
    %1187 = vmatpush1.msra.mxu0 %v407
    %1188 = vmatprep.subr.mxu0 %v404
    %1189 = vmatpush1.msra.mxu0 %v403
    %1190 = vmatprep.subr.mxu0 %v400
    %1191 = vmatpush1.msra.mxu0 %v399
    %1192 = vmatprep.subr.mxu0 %v396
    %1193 = vmatpush1.msra.mxu0 %v395
    %1194 = vmatprep.subr.mxu0 %v392
    %1195 = vmatpush1.msra.mxu0 %v391
    %1196 = vmatprep.subr.mxu0 %v388
    %1197 = vmatpush1.msra.mxu0 %v387
    %1198 = vmatprep.subr.mxu0 %v384
    %1199 = vmatpush1.msra.mxu0 %v383
    %1200 = vmatprep.subr.mxu0 %v380
    %1201 = vmatpush1.msra.mxu0 %v379
    %1202 = vmatprep.subr.mxu0 %v376
    %1203 = vmatpush1.msra.mxu0 %v375
    %1204 = vmatprep.subr.mxu0 %v372
    %1205 = vmatpush1.msra.mxu0 %v371
    %1206 = vmatprep.subr.mxu0 %v368
    %1207 = vmatpush1.msra.mxu0 %v367
    %1208 = vmatprep.subr.mxu0 0.0
    %1209 = vmatpush2.msra.mxu0 0.0
    %1210 = vmatprep.subr.mxu0 0.0
    %1211 = vmatpush2.msra.mxu0 0.0
    %1212 = vmatprep.subr.mxu0 0.0
    %1213 = vmatpush2.msra.mxu0 0.0
    %1214 = vmatprep.subr.mxu0 0.0
    %1215 = vmatpush2.msra.mxu0 0.0
    %1216 = vmatprep.subr.mxu0 0.0
    %1217 = vmatpush2.msra.mxu0 0.0
    %1218 = vmatprep.subr.mxu0 0.0
    %1219 = vmatpush2.msra.mxu0 0.0
    %1220 = vmatprep.subr.mxu0 0.0
    %1221 = vmatpush2.msra.mxu0 0.0
    %1222 = vmatprep.subr.mxu0 0.0
    %1223 = vmatpush2.msra.mxu0 0.0
    %1224 = vmatprep.subr.mxu0 0.0
    %1225 = vmatpush2.msra.mxu0 0.0
    %1226 = vmatprep.subr.mxu0 0.0
    %1227 = vmatpush2.msra.mxu0 0.0
    %1228 = vmatprep.subr.mxu0 0.0
    %1229 = vmatpush2.msra.mxu0 0.0
    %1230 = vmatprep.subr.mxu0 0.0
    %1231 = vmatpush2.msra.mxu0 0.0
    %1232 = vmatprep.subr.mxu0 0.0
    %1233 = vmatpush2.msra.mxu0 0.0
    %1234 = vmatprep.subr.mxu0 0.0
    %1235 = vmatpush2.msra.mxu0 0.0
    %1236 = vmatprep.subr.mxu0 0.0
    %1237 = vmatpush2.msra.mxu0 0.0
    %1238 = vmatprep.subr.mxu0 0.0
    %1239 = vmatpush2.msra.mxu0 0.0
    %1240 = vmatprep.mubr.f32.mxu0 0.0
    %1241 = vmatmul.mubr.f32.gmra.mxu0 %v1099
    %v1242 = vpop.f32.mrf.mxu0
    %v1243 = vadd.f32 0.0, %v1242
    %v1244 = vpop.f32.mrf.mxu0
    %v1245 = vadd.f32 0.0, %v1244
    %1246 = vdwg.mxu0
    %v1247 = vadd.f32 %v1101, %v1172
    %v1248 = vadd.f32 %v1102, %v1174
    %v1249 = vadd.f32 %v1103, %v1243
    %v1250 = vadd.f32 %v1104, %v1245
    %v1251 = vmul.f32 %v1247, 0.5
    %v1252 = vtanh.pop %v1251
    %v1253 = vmul.f32 %v1252, 0.5
    %v1254 = vadd.f32 %v1253, 0.5
    %v1255 = vmul.f32 %v1248, 0.5
    %v1256 = vtanh.pop %v1255
    %v1257 = vmul.f32 %v1256, 0.5
    %v1258 = vadd.f32 %v1257, 0.5
    %v1259 = vtanh.pop %v1249
    %v1260 = vmul.f32 %v1250, 0.5
    %v1261 = vtanh.pop %v1260
    %v1262 = vmul.f32 %v1261, 0.5
    %v1263 = vadd.f32 %v1262, 0.5
    %v1264 = vmul.f32 %v1258, %v1097
    %v1265 = vmul.f32 %v1254, %v1259
    %v1266 = vadd.f32 %v1264, %v1265
    %v1267 = vtanh.pop %v1266
    %v1268 = vmul.f32 %v1263, %v1267
    %s1269 = scalar_lea.vmem [#allocation2], 160
    %v1270 = vld [vmem:[%s1269] sm:$0xff]
    %v1271 = vld [vmem:[%s1269 + $0x8] sm:$0xff]
    %v1272 = vld [vmem:[%s1269 + $0x10] sm:$0xff]
    %v1273 = vld [vmem:[%s1269 + $0x18] sm:$0xff]
    %1274 = vmatprep.subr.mxu0 %v426
    %1275 = vmatpush1.msra.mxu0 %v425
    %1276 = vmatprep.subr.mxu0 %v422
    %1277 = vmatpush1.msra.mxu0 %v421
    %1278 = vmatprep.subr.mxu0 %v418
    %1279 = vmatpush1.msra.mxu0 %v417
    %1280 = vmatprep.subr.mxu0 %v414
    %1281 = vmatpush1.msra.mxu0 %v413
    %1282 = vmatprep.subr.mxu0 %v410
    %1283 = vmatpush1.msra.mxu0 %v409
    %1284 = vmatprep.subr.mxu0 %v406
    %1285 = vmatpush1.msra.mxu0 %v405
    %1286 = vmatprep.subr.mxu0 %v402
    %1287 = vmatpush1.msra.mxu0 %v401
    %1288 = vmatprep.subr.mxu0 %v398
    %1289 = vmatpush1.msra.mxu0 %v397
    %1290 = vmatprep.subr.mxu0 %v394
    %1291 = vmatpush1.msra.mxu0 %v393
    %1292 = vmatprep.subr.mxu0 %v390
    %1293 = vmatpush1.msra.mxu0 %v389
    %1294 = vmatprep.subr.mxu0 %v386
    %1295 = vmatpush1.msra.mxu0 %v385
    %1296 = vmatprep.subr.mxu0 %v382
    %1297 = vmatpush1.msra.mxu0 %v381
    %1298 = vmatprep.subr.mxu0 %v378
    %1299 = vmatpush1.msra.mxu0 %v377
    %1300 = vmatprep.subr.mxu0 %v374
    %1301 = vmatpush1.msra.mxu0 %v373
    %1302 = vmatprep.subr.mxu0 %v370
    %1303 = vmatpush1.msra.mxu0 %v369
    %1304 = vmatprep.subr.mxu0 %v366
    %1305 = vmatpush1.msra.mxu0 %v365
    %1306 = vmatprep.subr.mxu0 0.0
    %1307 = vmatpush2.msra.mxu0 0.0
    %1308 = vmatprep.subr.mxu0 0.0
    %1309 = vmatpush2.msra.mxu0 0.0
    %1310 = vmatprep.subr.mxu0 0.0
    %1311 = vmatpush2.msra.mxu0 0.0
    %1312 = vmatprep.subr.mxu0 0.0
    %1313 = vmatpush2.msra.mxu0 0.0
    %1314 = vmatprep.subr.mxu0 0.0
    %1315 = vmatpush2.msra.mxu0 0.0
    %1316 = vmatprep.subr.mxu0 0.0
    %1317 = vmatpush2.msra.mxu0 0.0
    %1318 = vmatprep.subr.mxu0 0.0
    %1319 = vmatpush2.msra.mxu0 0.0
    %1320 = vmatprep.subr.mxu0 0.0
    %1321 = vmatpush2.msra.mxu0 0.0
    %1322 = vmatprep.subr.mxu0 0.0
    %1323 = vmatpush2.msra.mxu0 0.0
    %1324 = vmatprep.subr.mxu0 0.0
    %1325 = vmatpush2.msra.mxu0 0.0
    %1326 = vmatprep.subr.mxu0 0.0
    %1327 = vmatpush2.msra.mxu0 0.0
    %1328 = vmatprep.subr.mxu0 0.0
    %1329 = vmatpush2.msra.mxu0 0.0
    %1330 = vmatprep.subr.mxu0 0.0
    %1331 = vmatpush2.msra.mxu0 0.0
    %1332 = vmatprep.subr.mxu0 0.0
    %1333 = vmatpush2.msra.mxu0 0.0
    %1334 = vmatprep.subr.mxu0 0.0
    %1335 = vmatpush2.msra.mxu0 0.0
    %1336 = vmatprep.subr.mxu0 0.0
    %1337 = vmatpush2.msra.mxu0 0.0
    %1338 = vmatprep.mubr.f32.mxu0 0.0
    %1339 = vmatmul.mubr.f32.gmra.mxu0 %v1268
    %v1340 = vpop.f32.mrf.mxu0
    %v1341 = vadd.f32 0.0, %v1340
    %v1342 = vpop.f32.mrf.mxu0
    %v1343 = vadd.f32 0.0, %v1342
    %1344 = vdwg.mxu0
    %1345 = vmatprep.subr.mxu0 %v428
    %1346 = vmatpush1.msra.mxu0 %v427
    %1347 = vmatprep.subr.mxu0 %v424
    %1348 = vmatpush1.msra.mxu0 %v423
    %1349 = vmatprep.subr.mxu0 %v420
    %1350 = vmatpush1.msra.mxu0 %v419
    %1351 = vmatprep.subr.mxu0 %v416
    %1352 = vmatpush1.msra.mxu0 %v415
    %1353 = vmatprep.subr.mxu0 %v412
    %1354 = vmatpush1.msra.mxu0 %v411
    %1355 = vmatprep.subr.mxu0 %v408
    %1356 = vmatpush1.msra.mxu0 %v407
    %1357 = vmatprep.subr.mxu0 %v404
    %1358 = vmatpush1.msra.mxu0 %v403
    %1359 = vmatprep.subr.mxu0 %v400
    %1360 = vmatpush1.msra.mxu0 %v399
    %1361 = vmatprep.subr.mxu0 %v396
    %1362 = vmatpush1.msra.mxu0 %v395
    %1363 = vmatprep.subr.mxu0 %v392
    %1364 = vmatpush1.msra.mxu0 %v391
    %1365 = vmatprep.subr.mxu0 %v388
    %1366 = vmatpush1.msra.mxu0 %v387
    %1367 = vmatprep.subr.mxu0 %v384
    %1368 = vmatpush1.msra.mxu0 %v383
    %1369 = vmatprep.subr.mxu0 %v380
    %1370 = vmatpush1.msra.mxu0 %v379
    %1371 = vmatprep.subr.mxu0 %v376
    %1372 = vmatpush1.msra.mxu0 %v375
    %1373 = vmatprep.subr.mxu0 %v372
    %1374 = vmatpush1.msra.mxu0 %v371
    %1375 = vmatprep.subr.mxu0 %v368
    %1376 = vmatpush1.msra.mxu0 %v367
    %1377 = vmatprep.subr.mxu0 0.0
    %1378 = vmatpush2.msra.mxu0 0.0
    %1379 = vmatprep.subr.mxu0 0.0
    %1380 = vmatpush2.msra.mxu0 0.0
    %1381 = vmatprep.subr.mxu0 0.0
    %1382 = vmatpush2.msra.mxu0 0.0
    %1383 = vmatprep.subr.mxu0 0.0
    %1384 = vmatpush2.msra.mxu0 0.0
    %1385 = vmatprep.subr.mxu0 0.0
    %1386 = vmatpush2.msra.mxu0 0.0
    %1387 = vmatprep.subr.mxu0 0.0
    %1388 = vmatpush2.msra.mxu0 0.0
    %1389 = vmatprep.subr.mxu0 0.0
    %1390 = vmatpush2.msra.mxu0 0.0
    %1391 = vmatprep.subr.mxu0 0.0
    %1392 = vmatpush2.msra.mxu0 0.0
    %1393 = vmatprep.subr.mxu0 0.0
    %1394 = vmatpush2.msra.mxu0 0.0
    %1395 = vmatprep.subr.mxu0 0.0
    %1396 = vmatpush2.msra.mxu0 0.0
    %1397 = vmatprep.subr.mxu0 0.0
    %1398 = vmatpush2.msra.mxu0 0.0
    %1399 = vmatprep.subr.mxu0 0.0
    %1400 = vmatpush2.msra.mxu0 0.0
    %1401 = vmatprep.subr.mxu0 0.0
    %1402 = vmatpush2.msra.mxu0 0.0
    %1403 = vmatprep.subr.mxu0 0.0
    %1404 = vmatpush2.msra.mxu0 0.0
    %1405 = vmatprep.subr.mxu0 0.0
    %1406 = vmatpush2.msra.mxu0 0.0
    %1407 = vmatprep.subr.mxu0 0.0
    %1408 = vmatpush2.msra.mxu0 0.0
    %1409 = vmatprep.mubr.f32.mxu0 0.0
    %1410 = vmatmul.mubr.f32.gmra.mxu0 %v1268
    %v1411 = vpop.f32.mrf.mxu0
    %v1412 = vadd.f32 0.0, %v1411
    %v1413 = vpop.f32.mrf.mxu0
    %v1414 = vadd.f32 0.0, %v1413
    %1415 = vdwg.mxu0
    %v1416 = vadd.f32 %v1270, %v1341
    %v1417 = vadd.f32 %v1271, %v1343
    %v1418 = vadd.f32 %v1272, %v1412
    %v1419 = vadd.f32 %v1273, %v1414
    %v1420 = vmul.f32 %v1416, 0.5
    %v1421 = vtanh.pop %v1420
    %v1422 = vmul.f32 %v1421, 0.5
    %v1423 = vadd.f32 %v1422, 0.5
    %v1424 = vmul.f32 %v1417, 0.5
    %v1425 = vtanh.pop %v1424
    %v1426 = vmul.f32 %v1425, 0.5
    %v1427 = vadd.f32 %v1426, 0.5
    %v1428 = vtanh.pop %v1418
    %v1429 = vmul.f32 %v1419, 0.5
    %v1430 = vtanh.pop %v1429
    %v1431 = vmul.f32 %v1430, 0.5
    %v1432 = vadd.f32 %v1431, 0.5
    %v1433 = vmul.f32 %v1427, %v1266
    %v1434 = vmul.f32 %v1423, %v1428
    %v1435 = vadd.f32 %v1433, %v1434
    %v1436 = vtanh.pop %v1435
    %v1437 = vmul.f32 %v1432, %v1436
    %s1438 = scalar_lea.vmem [#allocation2], 192
    %v1439 = vld [vmem:[%s1438] sm:$0xff]
    %v1440 = vld [vmem:[%s1438 + $0x8] sm:$0xff]
    %v1441 = vld [vmem:[%s1438 + $0x10] sm:$0xff]
    %v1442 = vld [vmem:[%s1438 + $0x18] sm:$0xff]
    %1443 = vmatprep.subr.mxu0 %v426
    %1444 = vmatpush1.msra.mxu0 %v425
    %1445 = vmatprep.subr.mxu0 %v422
    %1446 = vmatpush1.msra.mxu0 %v421
    %1447 = vmatprep.subr.mxu0 %v418
    %1448 = vmatpush1.msra.mxu0 %v417
    %1449 = vmatprep.subr.mxu0 %v414
    %1450 = vmatpush1.msra.mxu0 %v413
    %1451 = vmatprep.subr.mxu0 %v410
    %1452 = vmatpush1.msra.mxu0 %v409
    %1453 = vmatprep.subr.mxu0 %v406
    %1454 = vmatpush1.msra.mxu0 %v405
    %1455 = vmatprep.subr.mxu0 %v402
    %1456 = vmatpush1.msra.mxu0 %v401
    %1457 = vmatprep.subr.mxu0 %v398
    %1458 = vmatpush1.msra.mxu0 %v397
    %1459 = vmatprep.subr.mxu0 %v394
    %1460 = vmatpush1.msra.mxu0 %v393
    %1461 = vmatprep.subr.mxu0 %v390
    %1462 = vmatpush1.msra.mxu0 %v389
    %1463 = vmatprep.subr.mxu0 %v386
    %1464 = vmatpush1.msra.mxu0 %v385
    %1465 = vmatprep.subr.mxu0 %v382
    %1466 = vmatpush1.msra.mxu0 %v381
    %1467 = vmatprep.subr.mxu0 %v378
    %1468 = vmatpush1.msra.mxu0 %v377
    %1469 = vmatprep.subr.mxu0 %v374
    %1470 = vmatpush1.msra.mxu0 %v373
    %1471 = vmatprep.subr.mxu0 %v370
    %1472 = vmatpush1.msra.mxu0 %v369
    %1473 = vmatprep.subr.mxu0 %v366
    %1474 = vmatpush1.msra.mxu0 %v365
    %1475 = vmatprep.subr.mxu0 0.0
    %1476 = vmatpush2.msra.mxu0 0.0
    %1477 = vmatprep.subr.mxu0 0.0
    %1478 = vmatpush2.msra.mxu0 0.0
    %1479 = vmatprep.subr.mxu0 0.0
    %1480 = vmatpush2.msra.mxu0 0.0
    %1481 = vmatprep.subr.mxu0 0.0
    %1482 = vmatpush2.msra.mxu0 0.0
    %1483 = vmatprep.subr.mxu0 0.0
    %1484 = vmatpush2.msra.mxu0 0.0
    %1485 = vmatprep.subr.mxu0 0.0
    %1486 = vmatpush2.msra.mxu0 0.0
    %1487 = vmatprep.subr.mxu0 0.0
    %1488 = vmatpush2.msra.mxu0 0.0
    %1489 = vmatprep.subr.mxu0 0.0
    %1490 = vmatpush2.msra.mxu0 0.0
    %1491 = vmatprep.subr.mxu0 0.0
    %1492 = vmatpush2.msra.mxu0 0.0
    %1493 = vmatprep.subr.mxu0 0.0
    %1494 = vmatpush2.msra.mxu0 0.0
    %1495 = vmatprep.subr.mxu0 0.0
    %1496 = vmatpush2.msra.mxu0 0.0
    %1497 = vmatprep.subr.mxu0 0.0
    %1498 = vmatpush2.msra.mxu0 0.0
    %1499 = vmatprep.subr.mxu0 0.0
    %1500 = vmatpush2.msra.mxu0 0.0
    %1501 = vmatprep.subr.mxu0 0.0
    %1502 = vmatpush2.msra.mxu0 0.0
    %1503 = vmatprep.subr.mxu0 0.0
    %1504 = vmatpush2.msra.mxu0 0.0
    %1505 = vmatprep.subr.mxu0 0.0
    %1506 = vmatpush2.msra.mxu0 0.0
    %1507 = vmatprep.mubr.f32.mxu0 0.0
    %1508 = vmatmul.mubr.f32.gmra.mxu0 %v1437
    %v1509 = vpop.f32.mrf.mxu0
    %v1510 = vadd.f32 0.0, %v1509
    %v1511 = vpop.f32.mrf.mxu0
    %v1512 = vadd.f32 0.0, %v1511
    %1513 = vdwg.mxu0
    %1514 = vmatprep.subr.mxu0 %v428
    %1515 = vmatpush1.msra.mxu0 %v427
    %1516 = vmatprep.subr.mxu0 %v424
    %1517 = vmatpush1.msra.mxu0 %v423
    %1518 = vmatprep.subr.mxu0 %v420
    %1519 = vmatpush1.msra.mxu0 %v419
    %1520 = vmatprep.subr.mxu0 %v416
    %1521 = vmatpush1.msra.mxu0 %v415
    %1522 = vmatprep.subr.mxu0 %v412
    %1523 = vmatpush1.msra.mxu0 %v411
    %1524 = vmatprep.subr.mxu0 %v408
    %1525 = vmatpush1.msra.mxu0 %v407
    %1526 = vmatprep.subr.mxu0 %v404
    %1527 = vmatpush1.msra.mxu0 %v403
    %1528 = vmatprep.subr.mxu0 %v400
    %1529 = vmatpush1.msra.mxu0 %v399
    %1530 = vmatprep.subr.mxu0 %v396
    %1531 = vmatpush1.msra.mxu0 %v395
    %1532 = vmatprep.subr.mxu0 %v392
    %1533 = vmatpush1.msra.mxu0 %v391
    %1534 = vmatprep.subr.mxu0 %v388
    %1535 = vmatpush1.msra.mxu0 %v387
    %1536 = vmatprep.subr.mxu0 %v384
    %1537 = vmatpush1.msra.mxu0 %v383
    %1538 = vmatprep.subr.mxu0 %v380
    %1539 = vmatpush1.msra.mxu0 %v379
    %1540 = vmatprep.subr.mxu0 %v376
    %1541 = vmatpush1.msra.mxu0 %v375
    %1542 = vmatprep.subr.mxu0 %v372
    %1543 = vmatpush1.msra.mxu0 %v371
    %1544 = vmatprep.subr.mxu0 %v368
    %1545 = vmatpush1.msra.mxu0 %v367
    %1546 = vmatprep.subr.mxu0 0.0
    %1547 = vmatpush2.msra.mxu0 0.0
    %1548 = vmatprep.subr.mxu0 0.0
    %1549 = vmatpush2.msra.mxu0 0.0
    %1550 = vmatprep.subr.mxu0 0.0
    %1551 = vmatpush2.msra.mxu0 0.0
    %1552 = vmatprep.subr.mxu0 0.0
    %1553 = vmatpush2.msra.mxu0 0.0
    %1554 = vmatprep.subr.mxu0 0.0
    %1555 = vmatpush2.msra.mxu0 0.0
    %1556 = vmatprep.subr.mxu0 0.0
    %1557 = vmatpush2.msra.mxu0 0.0
    %1558 = vmatprep.subr.mxu0 0.0
    %1559 = vmatpush2.msra.mxu0 0.0
    %1560 = vmatprep.subr.mxu0 0.0
    %1561 = vmatpush2.msra.mxu0 0.0
    %1562 = vmatprep.subr.mxu0 0.0
    %1563 = vmatpush2.msra.mxu0 0.0
    %1564 = vmatprep.subr.mxu0 0.0
    %1565 = vmatpush2.msra.mxu0 0.0
    %1566 = vmatprep.subr.mxu0 0.0
    %1567 = vmatpush2.msra.mxu0 0.0
    %1568 = vmatprep.subr.mxu0 0.0
    %1569 = vmatpush2.msra.mxu0 0.0
    %1570 = vmatprep.subr.mxu0 0.0
    %1571 = vmatpush2.msra.mxu0 0.0
    %1572 = vmatprep.subr.mxu0 0.0
    %1573 = vmatpush2.msra.mxu0 0.0
    %1574 = vmatprep.subr.mxu0 0.0
    %1575 = vmatpush2.msra.mxu0 0.0
    %1576 = vmatprep.subr.mxu0 0.0
    %1577 = vmatpush2.msra.mxu0 0.0
    %1578 = vmatprep.mubr.f32.mxu0 0.0
    %1579 = vmatmul.mubr.f32.gmra.mxu0 %v1437
    %v1580 = vpop.f32.mrf.mxu0
    %v1581 = vadd.f32 0.0, %v1580
    %v1582 = vpop.f32.mrf.mxu0
    %v1583 = vadd.f32 0.0, %v1582
    %1584 = vdwg.mxu0
    %v1585 = vadd.f32 %v1439, %v1510
    %v1586 = vadd.f32 %v1440, %v1512
    %v1587 = vadd.f32 %v1441, %v1581
    %v1588 = vadd.f32 %v1442, %v1583
    %v1589 = vmul.f32 %v1585, 0.5
    %v1590 = vtanh.pop %v1589
    %v1591 = vmul.f32 %v1590, 0.5
    %v1592 = vadd.f32 %v1591, 0.5
    %v1593 = vmul.f32 %v1586, 0.5
    %v1594 = vtanh.pop %v1593
    %v1595 = vmul.f32 %v1594, 0.5
    %v1596 = vadd.f32 %v1595, 0.5
    %v1597 = vtanh.pop %v1587
    %v1598 = vmul.f32 %v1588, 0.5
    %v1599 = vtanh.pop %v1598
    %v1600 = vmul.f32 %v1599, 0.5
    %v1601 = vadd.f32 %v1600, 0.5
    %v1602 = vmul.f32 %v1596, %v1435
    %v1603 = vmul.f32 %v1592, %v1597
    %v1604 = vadd.f32 %v1602, %v1603
    %v1605 = vtanh.pop %v1604
    %v1606 = vmul.f32 %v1601, %v1605
    %s1607 = scalar_lea.vmem [#allocation2], 224
    %v1608 = vld [vmem:[%s1607] sm:$0xff]
    %v1609 = vld [vmem:[%s1607 + $0x8] sm:$0xff]
    %v1610 = vld [vmem:[%s1607 + $0x10] sm:$0xff]
    %v1611 = vld [vmem:[%s1607 + $0x18] sm:$0xff]
    %1612 = vmatprep.subr.mxu0 %v426
    %1613 = vmatpush1.msra.mxu0 %v425
    %1614 = vmatprep.subr.mxu0 %v422
    %1615 = vmatpush1.msra.mxu0 %v421
    %1616 = vmatprep.subr.mxu0 %v418
    %1617 = vmatpush1.msra.mxu0 %v417
    %1618 = vmatprep.subr.mxu0 %v414
    %1619 = vmatpush1.msra.mxu0 %v413
    %1620 = vmatprep.subr.mxu0 %v410
    %1621 = vmatpush1.msra.mxu0 %v409
    %1622 = vmatprep.subr.mxu0 %v406
    %1623 = vmatpush1.msra.mxu0 %v405
    %1624 = vmatprep.subr.mxu0 %v402
    %1625 = vmatpush1.msra.mxu0 %v401
    %1626 = vmatprep.subr.mxu0 %v398
    %1627 = vmatpush1.msra.mxu0 %v397
    %1628 = vmatprep.subr.mxu0 %v394
    %1629 = vmatpush1.msra.mxu0 %v393
    %1630 = vmatprep.subr.mxu0 %v390
    %1631 = vmatpush1.msra.mxu0 %v389
    %1632 = vmatprep.subr.mxu0 %v386
    %1633 = vmatpush1.msra.mxu0 %v385
    %1634 = vmatprep.subr.mxu0 %v382
    %1635 = vmatpush1.msra.mxu0 %v381
    %1636 = vmatprep.subr.mxu0 %v378
    %1637 = vmatpush1.msra.mxu0 %v377
    %1638 = vmatprep.subr.mxu0 %v374
    %1639 = vmatpush1.msra.mxu0 %v373
    %1640 = vmatprep.subr.mxu0 %v370
    %1641 = vmatpush1.msra.mxu0 %v369
    %1642 = vmatprep.subr.mxu0 %v366
    %1643 = vmatpush1.msra.mxu0 %v365
    %1644 = vmatprep.subr.mxu0 0.0
    %1645 = vmatpush2.msra.mxu0 0.0
    %1646 = vmatprep.subr.mxu0 0.0
    %1647 = vmatpush2.msra.mxu0 0.0
    %1648 = vmatprep.subr.mxu0 0.0
    %1649 = vmatpush2.msra.mxu0 0.0
    %1650 = vmatprep.subr.mxu0 0.0
    %1651 = vmatpush2.msra.mxu0 0.0
    %1652 = vmatprep.subr.mxu0 0.0
    %1653 = vmatpush2.msra.mxu0 0.0
    %1654 = vmatprep.subr.mxu0 0.0
    %1655 = vmatpush2.msra.mxu0 0.0
    %1656 = vmatprep.subr.mxu0 0.0
    %1657 = vmatpush2.msra.mxu0 0.0
    %1658 = vmatprep.subr.mxu0 0.0
    %1659 = vmatpush2.msra.mxu0 0.0
    %1660 = vmatprep.subr.mxu0 0.0
    %1661 = vmatpush2.msra.mxu0 0.0
    %1662 = vmatprep.subr.mxu0 0.0
    %1663 = vmatpush2.msra.mxu0 0.0
    %1664 = vmatprep.subr.mxu0 0.0
    %1665 = vmatpush2.msra.mxu0 0.0
    %1666 = vmatprep.subr.mxu0 0.0
    %1667 = vmatpush2.msra.mxu0 0.0
    %1668 = vmatprep.subr.mxu0 0.0
    %1669 = vmatpush2.msra.mxu0 0.0
    %1670 = vmatprep.subr.mxu0 0.0
    %1671 = vmatpush2.msra.mxu0 0.0
    %1672 = vmatprep.subr.mxu0 0.0
    %1673 = vmatpush2.msra.mxu0 0.0
    %1674 = vmatprep.subr.mxu0 0.0
    %1675 = vmatpush2.msra.mxu0 0.0
    %1676 = vmatprep.mubr.f32.mxu0 0.0
    %1677 = vmatmul.mubr.f32.gmra.mxu0 %v1606
    %v1678 = vpop.f32.mrf.mxu0
    %v1679 = vadd.f32 0.0, %v1678
    %v1680 = vpop.f32.mrf.mxu0
    %v1681 = vadd.f32 0.0, %v1680
    %1682 = vdwg.mxu0
    %1683 = vmatprep.subr.mxu0 %v428
    %1684 = vmatpush1.msra.mxu0 %v427
    %1685 = vmatprep.subr.mxu0 %v424
    %1686 = vmatpush1.msra.mxu0 %v423
    %1687 = vmatprep.subr.mxu0 %v420
    %1688 = vmatpush1.msra.mxu0 %v419
    %1689 = vmatprep.subr.mxu0 %v416
    %1690 = vmatpush1.msra.mxu0 %v415
    %1691 = vmatprep.subr.mxu0 %v412
    %1692 = vmatpush1.msra.mxu0 %v411
    %1693 = vmatprep.subr.mxu0 %v408
    %1694 = vmatpush1.msra.mxu0 %v407
    %1695 = vmatprep.subr.mxu0 %v404
    %1696 = vmatpush1.msra.mxu0 %v403
    %1697 = vmatprep.subr.mxu0 %v400
    %1698 = vmatpush1.msra.mxu0 %v399
    %1699 = vmatprep.subr.mxu0 %v396
    %1700 = vmatpush1.msra.mxu0 %v395
    %1701 = vmatprep.subr.mxu0 %v392
    %1702 = vmatpush1.msra.mxu0 %v391
    %1703 = vmatprep.subr.mxu0 %v388
    %1704 = vmatpush1.msra.mxu0 %v387
    %1705 = vmatprep.subr.mxu0 %v384
    %1706 = vmatpush1.msra.mxu0 %v383
    %1707 = vmatprep.subr.mxu0 %v380
    %1708 = vmatpush1.msra.mxu0 %v379
    %1709 = vmatprep.subr.mxu0 %v376
    %1710 = vmatpush1.msra.mxu0 %v375
    %1711 = vmatprep.subr.mxu0 %v372
    %1712 = vmatpush1.msra.mxu0 %v371
    %1713 = vmatprep.subr.mxu0 %v368
    %1714 = vmatpush1.msra.mxu0 %v367
    %1715 = vmatprep.subr.mxu0 0.0
    %1716 = vmatpush2.msra.mxu0 0.0
    %1717 = vmatprep.subr.mxu0 0.0
    %1718 = vmatpush2.msra.mxu0 0.0
    %1719 = vmatprep.subr.mxu0 0.0
    %1720 = vmatpush2.msra.mxu0 0.0
    %1721 = vmatprep.subr.mxu0 0.0
    %1722 = vmatpush2.msra.mxu0 0.0
    %1723 = vmatprep.subr.mxu0 0.0
    %1724 = vmatpush2.msra.mxu0 0.0
    %1725 = vmatprep.subr.mxu0 0.0
    %1726 = vmatpush2.msra.mxu0 0.0
    %1727 = vmatprep.subr.mxu0 0.0
    %1728 = vmatpush2.msra.mxu0 0.0
    %1729 = vmatprep.subr.mxu0 0.0
    %1730 = vmatpush2.msra.mxu0 0.0
    %1731 = vmatprep.subr.mxu0 0.0
    %1732 = vmatpush2.msra.mxu0 0.0
    %1733 = vmatprep.subr.mxu0 0.0
    %1734 = vmatpush2.msra.mxu0 0.0
    %1735 = vmatprep.subr.mxu0 0.0
    %1736 = vmatpush2.msra.mxu0 0.0
    %1737 = vmatprep.subr.mxu0 0.0
    %1738 = vmatpush2.msra.mxu0 0.0
    %1739 = vmatprep.subr.mxu0 0.0
    %1740 = vmatpush2.msra.mxu0 0.0
    %1741 = vmatprep.subr.mxu0 0.0
    %1742 = vmatpush2.msra.mxu0 0.0
    %1743 = vmatprep.subr.mxu0 0.0
    %1744 = vmatpush2.msra.mxu0 0.0
    %1745 = vmatprep.subr.mxu0 0.0
    %1746 = vmatpush2.msra.mxu0 0.0
    %1747 = vmatprep.mubr.f32.mxu0 0.0
    %1748 = vmatmul.mubr.f32.gmra.mxu0 %v1606
    %v1749 = vpop.f32.mrf.mxu0
    %v1750 = vadd.f32 0.0, %v1749
    %v1751 = vpop.f32.mrf.mxu0
    %v1752 = vadd.f32 0.0, %v1751
    %1753 = vdwg.mxu0
    %v1754 = vadd.f32 %v1608, %v1679
    %v1755 = vadd.f32 %v1609, %v1681
    %v1756 = vadd.f32 %v1610, %v1750
    %v1757 = vadd.f32 %v1611, %v1752
    %v1758 = vmul.f32 %v1754, 0.5
    %v1759 = vtanh.pop %v1758
    %v1760 = vmul.f32 %v1759, 0.5
    %v1761 = vadd.f32 %v1760, 0.5
    %v1762 = vmul.f32 %v1755, 0.5
    %v1763 = vtanh.pop %v1762
    %v1764 = vmul.f32 %v1763, 0.5
    %v1765 = vadd.f32 %v1764, 0.5
    %v1766 = vtanh.pop %v1756
    %v1767 = vmul.f32 %v1757, 0.5
    %v1768 = vtanh.pop %v1767
    %v1769 = vmul.f32 %v1768, 0.5
    %v1770 = vadd.f32 %v1769, 0.5
    %v1771 = vmul.f32 %v1765, %v1604
    %v1772 = vmul.f32 %v1761, %v1766
    %v1773 = vadd.f32 %v1771, %v1772
    %v1774 = vtanh.pop %v1773
    %v1775 = vmul.f32 %v1770, %v1774
    %v1776 = vld [vmem:[%s4] sm:$0x1]
    %v1778 = vlaneseq
    %v1779 = vshrl.u32 %v1778, 7
    %v1780 = vsub.s32 0, %v1779
    %v1781 = vrot.slane %v1776, %v1780
    %v1783 = vmul.f32 %v1775, %v1781
    %1784 = vadd.xlane.f32.xlu0 %v1783
    %v1785 = vpop.xlane.xlu0 %1784
    %v1786 = vld [vmem:[#allocation3] sm:$0x1]
    %v1788 = vlaneseq
    %v1789 = vshrl.u32 %v1788, 7
    %v1790 = vsub.s32 0, %v1789
    %v1791 = vrot.slane %v1786, %v1790
    %v1793 = vadd.f32 %v1785, %v1791
    %v1794 = vmul.f32 %v1793, 0.5
    %v1795 = vtanh.pop %v1794
    %v1796 = vmul.f32 %v1795, 0.5
    %v1797 = vadd.f32 %v1796, 0.5
    %1799 = vset.pattern.permute.xlu0 0
    %1800 = vperm.xlu0 %1799, %v1797
    %v1801 = vpop.permute.xlu0 %1800
    %1803 = vst [vmem:[#allocation7] sm:$0xff] %v1801
    // Predicated region
    $region30: #{tpu_custom_call.1} parent=1 // pred_check
      _
    $region31: #{tpu_custom_call.1} parent=1 // pred_check_branch
      %1805 = sbr.rel (0) target = $region33
    $region32: #{tpu_custom_call.1} parent=1 // pred_region
      %s1807 = ssub.s32 128, 128
      %1808 = vsyncadd [#allocation6], %s1807
      %s1810 = sshll.u32 [#allocation7], 4
      %s1811 = int_to_ptr.vmem [resolvable:$true] %s1810
      %1813 = dma.vmem_to_hbm [thread:$0]  %s1811, 128, %s6, [#allocation6]
    $region33: #{tpu_custom_call.1} parent=1 // pred_fallthru
      _
    // Predicated region
    $region34: #{tpu_custom_call.1} parent=1 // pred_check
      _
    $region35: #{tpu_custom_call.1} parent=1 // pred_check_branch
      %1815 = sbr.rel (0) target = $region37
    $region36: #{tpu_custom_call.1} parent=1 // pred_region
      %1816 = dma.done [#allocation6], 128
    $region37: #{tpu_custom_call.1} parent=1 // pred_fallthru
      _
    %1817 = vsyncpa [#allocation5], 1
    %1818 = vsyncpa [#allocation6], 1

</llo_original>
